<compile_context>
chip_gen: v5e
topology: v5e:2x2
jax: 0.10.0
libtpu: 0.0.40
codegen_flags: <defaults>
</compile_context>

<pallas_src>
import functools

import jax
import jax.numpy as jnp
from jax.experimental import pallas as pl
from jax.experimental.pallas import tpu as pltpu

_NEG = -1e30  # "masked edge" logit; avoids -inf arithmetic inside the kernel


def _attention_heads(mask, z, al, ar, num_heads, feat):
    """Per-head GAT attention + aggregation.

    mask: [N, N] bool, mask[v, u] = edge u->v exists.
    z:    [N, num_heads*feat] projected features (head-major along lanes).
    al/ar:[num_heads, feat] attention vectors (src / dst).
    Returns list of num_heads arrays, each [N, feat] (aggregation, no bias/act).
    """
    outs = []
    for h in range(num_heads):
        zh = z[:, h * feat:(h + 1) * feat]          # [N, F] static lane slice
        al_h = al[h:h + 1, :]                        # [1, F]
        ar_h = ar[h:h + 1, :]                        # [1, F]

        # dst scores: VPU multiply + XLU lane reduce -> [N, 1] column
        er = jnp.sum(zh * ar_h, axis=-1, keepdims=True)
        # src scores directly in lane orientation via a tiny q@k^T-style matmul:
        # [1,F] x [N,F] contracting on F -> [1, N] row (cheapest way to get the
        # transpose; keeps the big VPU/XLU path free for the softmax).
        el_t = jax.lax.dot_general(al_h, zh, (((1,), (1,)), ((), ())),
                                   preferred_element_type=jnp.float32)

        e = er + el_t                                # [N_dst, N_src]
        e = jnp.where(e > 0.0, e, 0.2 * e)           # leaky_relu(negative_slope=0.2)
        e = jnp.where(mask, e, _NEG)                 # only real edges participate

        # edge softmax over incoming edges (lane axis), numerically stable
        m = jnp.max(e, axis=-1, keepdims=True)
        p = jnp.where(mask, jnp.exp(e - m), 0.0)
        alpha = p / jnp.sum(p, axis=-1, keepdims=True)

        # message aggregation on the MXU: [N,N] @ [N,F]
        outs.append(jnp.dot(alpha, zh, preferred_element_type=jnp.float32))
    return outs


def _gat2_kernel(adj_ref, x_ref, w0_ref, al0_ref, ar0_ref, b0_ref,
                 w1_ref, al1_ref, ar1_ref, b1_ref, out_ref,
                 *, heads0, heads1, hid, out_dim):
    mask = adj_ref[...] > 0.0                        # [N, N]
    x = x_ref[...]                                   # [N, Din]
    b0 = b0_ref[...]                                 # [1, heads0*hid]
    b1 = b1_ref[...]                                 # [1, heads1*out_dim]
    w1 = w1_ref[...]                                 # [heads0*hid, heads1*out_dim]

    # TODO(synk): feat_drop / attn_drop (p=0.6) are inference-mode identities here
    # (no in-kernel RNG dropout).

    # ---------------- layer 0: GATConv(in, hid, heads0), ELU ----------------
    z0 = jnp.dot(x, w0_ref[...], preferred_element_type=jnp.float32)  # [N, H0*hid]
    outs0 = _attention_heads(mask, z0, al0_ref[...], ar0_ref[...], heads0, hid)

    # flatten(1) + layer-1 input projection fused (no lane-concat needed):
    #   z1 = concat_h(ELU(rst_h + b_h)) @ W1 = sum_h ELU(rst_h + b_h) @ W1_h
    z1 = jnp.zeros((x.shape[0], heads1 * out_dim), jnp.float32)
    for h in range(heads0):
        a_h = outs0[h] + b0[:, h * hid:(h + 1) * hid]
        a_h = jnp.where(a_h > 0.0, a_h, jnp.exp(a_h) - 1.0)           # ELU (EUP exp)
        z1 = z1 + jnp.dot(a_h, w1[h * hid:(h + 1) * hid, :],
                          preferred_element_type=jnp.float32)

    # -------- layer 1: GATConv(heads0*hid, out, heads1), no act, mean(heads) --------
    outs1 = _attention_heads(mask, z1, al1_ref[...], ar1_ref[...], heads1, out_dim)
    acc = jnp.zeros((x.shape[0], out_dim), jnp.float32)
    for h in range(heads1):
        acc = acc + outs1[h] + b1[:, h * out_dim:(h + 1) * out_dim]
    out_ref[...] = (acc * (1.0 / heads1)).astype(out_ref.dtype)


def gat_forward(adj, x, w0, al0, ar0, b0, w1, al1, ar1, b1):
    """adj: [N,N] (adj[v,u]=1 iff u->v), x: [N,Din] -> [N, out_dim]."""
    N = x.shape[0]
    heads0, hid = al0.shape
    heads1, out_dim = al1.shape
    kern = functools.partial(_gat2_kernel, heads0=heads0, heads1=heads1,
                             hid=hid, out_dim=out_dim)
    vmem = pl.BlockSpec(memory_space=pltpu.MemorySpace.VMEM)
    return pl.pallas_call(
        kern,
        out_shape=jax.ShapeDtypeStruct((N, out_dim), x.dtype),
        # Toy problem: keep everything VMEM-resident, no grid / pipelining.
        in_specs=[vmem] * 10,
        out_specs=vmem,
        compiler_params=pltpu.CompilerParams(vmem_limit_bytes=64 * 1024 * 1024),
    )(adj, x, w0, al0, ar0, b0, w1, al1, ar1, b1)


def _reference(adj, x, w0, al0, ar0, b0, w1, al1, ar1, b1):
    """Plain-JAX reference mirroring DGL GATConv / GAT_.forward exactly."""
    def layer(h, W, al, ar, b):
        N = h.shape[0]
        H, F = al.shape
        z = (h @ W).reshape(N, H, F)
        el = jnp.sum(z * al[None, :, :], axis=-1)        # [N, H] src scores
        er = jnp.sum(z * ar[None, :, :], axis=-1)        # [N, H] dst scores
        e = er[:, None, :] + el[None, :, :]              # [N_dst, N_src, H]
        e = jnp.where(e > 0, e, 0.2 * e)                 # leaky_relu(0.2)
        mask = (adj > 0)[:, :, None]
        e = jnp.where(mask, e, -jnp.inf)
        alpha = jax.nn.softmax(e, axis=1)                # edge softmax over src
        rst = jnp.einsum('vuh,uhf->vhf', alpha, z)       # [N, H, F]
        return rst + b.reshape(1, H, F)

    h = layer(x, w0, al0, ar0, b0)                       # [N, H0, hid]
    h = jax.nn.elu(h).reshape(x.shape[0], -1)            # activation + flatten(1)
    h = layer(h, w1, al1, ar1, b1)                       # [N, H1, out]
    return h.mean(axis=1)                                # GAT_ final mean over heads


if __name__ == "__main__":
    N = 16                      # nodes
    IN, HID, OUT = 32, 8, 8     # in_size, hid_size, out_size
    HEADS = (4, 2)              # heads per layer

    key = jax.random.PRNGKey(0)
    ks = jax.random.split(key, 10)

    # random directed graph with self-loops (every node has in-degree >= 1,
    # matching the usual add_self_loop preprocessing for GAT)
    adj = jax.random.bernoulli(ks[0], p=0.3, shape=(N, N)).astype(jnp.float32)
    adj = jnp.maximum(adj, jnp.eye(N, dtype=jnp.float32))

    x = jax.random.normal(ks[1], (N, IN), dtype=jnp.float32)

    def xavier(k, shape):
        bound = (6.0 / (shape[0] + shape[1])) ** 0.5
        return jax.random.uniform(k, shape, jnp.float32, -bound, bound)

    w0 = xavier(ks[2], (IN, HEADS[0] * HID))
    al0 = jax.random.normal(ks[3], (HEADS[0], HID), dtype=jnp.float32) * 0.3
    ar0 = jax.random.normal(ks[4], (HEADS[0], HID), dtype=jnp.float32) * 0.3
    b0 = jax.random.normal(ks[5], (1, HEADS[0] * HID), dtype=jnp.float32) * 0.1

    w1 = xavier(ks[6], (HEADS[0] * HID, HEADS[1] * OUT))
    al1 = jax.random.normal(ks[7], (HEADS[1], OUT), dtype=jnp.float32) * 0.3
    ar1 = jax.random.normal(ks[8], (HEADS[1], OUT), dtype=jnp.float32) * 0.3
    b1 = jax.random.normal(ks[9], (1, HEADS[1] * OUT), dtype=jnp.float32) * 0.1

    out = gat_forward(adj, x, w0, al0, ar0, b0, w1, al1, ar1, b1)
    out = jax.block_until_ready(out)

    ref = _reference(adj, x, w0, al0, ar0, b0, w1, al1, ar1, b1)
    assert out.shape == (N, OUT)
    assert jnp.allclose(out, ref, atol=1e-4, rtol=1e-4), float(jnp.max(jnp.abs(out - ref)))

    print("KERNEL_OK")
</pallas_src>

<mosaic_0001>
module attributes {stable_mosaic.version = 11 : i64} {
  func.func @_gat2_kernel(%arg0: memref<16x16xf32, #tpu.memory_space<vmem>>, %arg1: memref<16x32xf32, #tpu.memory_space<vmem>>, %arg2: memref<32x32xf32, #tpu.memory_space<vmem>>, %arg3: memref<4x8xf32, #tpu.memory_space<vmem>>, %arg4: memref<4x8xf32, #tpu.memory_space<vmem>>, %arg5: memref<1x32xf32, #tpu.memory_space<vmem>>, %arg6: memref<32x16xf32, #tpu.memory_space<vmem>>, %arg7: memref<2x8xf32, #tpu.memory_space<vmem>>, %arg8: memref<2x8xf32, #tpu.memory_space<vmem>>, %arg9: memref<1x16xf32, #tpu.memory_space<vmem>>, %arg10: memref<16x8xf32, #tpu.memory_space<vmem>>) attributes {dimension_semantics = [], scalar_prefetch = 0 : i64, scratch_operands = 0 : i64, tpu.core_type = #tpu.core_type<tc>} {
    %c0 = arith.constant 0 : index
    %c0_0 = arith.constant 0 : index
    %0 = vector.load %arg0[%c0, %c0_0] : memref<16x16xf32, #tpu.memory_space<vmem>>, vector<16x16xf32>
    %cst = arith.constant 0.000000e+00 : f32
    %1 = vector.broadcast %cst : f32 to vector<16x16xf32>
    %2 = arith.cmpf ogt, %0, %1 : vector<16x16xf32>
    %c0_1 = arith.constant 0 : index
    %c0_2 = arith.constant 0 : index
    %3 = vector.load %arg1[%c0_1, %c0_2] : memref<16x32xf32, #tpu.memory_space<vmem>>, vector<16x32xf32>
    %c0_3 = arith.constant 0 : index
    %c0_4 = arith.constant 0 : index
    %4 = vector.load %arg5[%c0_3, %c0_4] : memref<1x32xf32, #tpu.memory_space<vmem>>, vector<1x32xf32>
    %c0_5 = arith.constant 0 : index
    %c0_6 = arith.constant 0 : index
    %5 = vector.load %arg9[%c0_5, %c0_6] : memref<1x16xf32, #tpu.memory_space<vmem>>, vector<1x16xf32>
    %c0_7 = arith.constant 0 : index
    %c0_8 = arith.constant 0 : index
    %6 = vector.load %arg6[%c0_7, %c0_8] : memref<32x16xf32, #tpu.memory_space<vmem>>, vector<32x16xf32>
    %c0_9 = arith.constant 0 : index
    %c0_10 = arith.constant 0 : index
    %7 = vector.load %arg2[%c0_9, %c0_10] : memref<32x32xf32, #tpu.memory_space<vmem>>, vector<32x32xf32>
    %cst_11 = arith.constant dense<0.000000e+00> : vector<16x32xf32>
    %8 = tpu.matmul %3, %7, %cst_11 {dimension_numbers = #tpu.dot_dimension_numbers<[1], [0], [0], [1], [0, 0, 1, 1], [], []>} : vector<16x32xf32>, vector<32x32xf32>, vector<16x32xf32> -> vector<16x32xf32>
    %c0_12 = arith.constant 0 : index
    %c0_13 = arith.constant 0 : index
    %9 = vector.load %arg3[%c0_12, %c0_13] : memref<4x8xf32, #tpu.memory_space<vmem>>, vector<4x8xf32>
    %c0_14 = arith.constant 0 : index
    %c0_15 = arith.constant 0 : index
    %10 = vector.load %arg4[%c0_14, %c0_15] : memref<4x8xf32, #tpu.memory_space<vmem>>, vector<4x8xf32>
    %11 = vector.extract_strided_slice %8 {offsets = [0, 0], sizes = [16, 8], strides = [1, 1]} : vector<16x32xf32> to vector<16x8xf32>
    %12 = vector.extract_strided_slice %9 {offsets = [0, 0], sizes = [1, 8], strides = [1, 1]} : vector<4x8xf32> to vector<1x8xf32>
    %13 = vector.extract_strided_slice %10 {offsets = [0, 0], sizes = [1, 8], strides = [1, 1]} : vector<4x8xf32> to vector<1x8xf32>
    %14 = vector.broadcast %13 : vector<1x8xf32> to vector<16x8xf32>
    %15 = arith.mulf %11, %14 : vector<16x8xf32>
    %cst_16 = arith.constant dense<0.000000e+00> : vector<16xf32>
    %16 = vector.multi_reduction <add>, %15, %cst_16 [1] : vector<16x8xf32> to vector<16xf32>
    %17 = vector.shape_cast %16 : vector<16xf32> to vector<16x1xf32>
    %cst_17 = arith.constant dense<0.000000e+00> : vector<1x16xf32>
    %18 = tpu.matmul %12, %11, %cst_17 {dimension_numbers = #tpu.dot_dimension_numbers<[1], [1], [0], [0], [0, 0, 1, 0], [], []>} : vector<1x8xf32>, vector<16x8xf32>, vector<1x16xf32> -> vector<1x16xf32>
    %19 = vector.broadcast %17 : vector<16x1xf32> to vector<16x16xf32>
    %20 = vector.broadcast %18 : vector<1x16xf32> to vector<16x16xf32>
    %21 = arith.addf %19, %20 : vector<16x16xf32>
    %cst_18 = arith.constant 0.000000e+00 : f32
    %22 = vector.broadcast %cst_18 : f32 to vector<16x16xf32>
    %23 = arith.cmpf ogt, %21, %22 : vector<16x16xf32>
    %cst_19 = arith.constant 2.000000e-01 : f32
    %24 = vector.broadcast %cst_19 : f32 to vector<16x16xf32>
    %25 = arith.mulf %24, %21 : vector<16x16xf32>
    %26 = arith.select %23, %21, %25 : vector<16x16xi1>, vector<16x16xf32>
    %cst_20 = arith.constant -1.000000e+30 : f32
    %27 = vector.broadcast %cst_20 : f32 to vector<16x16xf32>
    %28 = arith.select %2, %26, %27 : vector<16x16xi1>, vector<16x16xf32>
    %cst_21 = arith.constant dense<0xFF800000> : vector<16xf32>
    %29 = vector.multi_reduction <maximumf>, %28, %cst_21 [1] : vector<16x16xf32> to vector<16xf32>
    %30 = vector.shape_cast %29 : vector<16xf32> to vector<16x1xf32>
    %31 = vector.broadcast %30 : vector<16x1xf32> to vector<16x16xf32>
    %32 = arith.subf %28, %31 : vector<16x16xf32>
    %33 = math.exp %32 : vector<16x16xf32>
    %cst_22 = arith.constant 0.000000e+00 : f32
    %34 = vector.broadcast %cst_22 : f32 to vector<16x16xf32>
    %35 = arith.select %2, %33, %34 : vector<16x16xi1>, vector<16x16xf32>
    %cst_23 = arith.constant dense<0.000000e+00> : vector<16xf32>
    %36 = vector.multi_reduction <add>, %35, %cst_23 [1] : vector<16x16xf32> to vector<16xf32>
    %37 = vector.shape_cast %36 : vector<16xf32> to vector<16x1xf32>
    %38 = vector.broadcast %37 : vector<16x1xf32> to vector<16x16xf32>
    %39 = arith.divf %35, %38 : vector<16x16xf32>
    %cst_24 = arith.constant dense<0.000000e+00> : vector<16x8xf32>
    %40 = tpu.matmul %39, %11, %cst_24 {dimension_numbers = #tpu.dot_dimension_numbers<[1], [0], [0], [1], [0, 0, 1, 1], [], []>} : vector<16x16xf32>, vector<16x8xf32>, vector<16x8xf32> -> vector<16x8xf32>
    %41 = vector.extract_strided_slice %8 {offsets = [0, 8], sizes = [16, 8], strides = [1, 1]} : vector<16x32xf32> to vector<16x8xf32>
    %42 = vector.extract_strided_slice %9 {offsets = [1, 0], sizes = [1, 8], strides = [1, 1]} : vector<4x8xf32> to vector<1x8xf32>
    %43 = vector.extract_strided_slice %10 {offsets = [1, 0], sizes = [1, 8], strides = [1, 1]} : vector<4x8xf32> to vector<1x8xf32>
    %44 = vector.broadcast %43 : vector<1x8xf32> to vector<16x8xf32>
    %45 = arith.mulf %41, %44 : vector<16x8xf32>
    %cst_25 = arith.constant dense<0.000000e+00> : vector<16xf32>
    %46 = vector.multi_reduction <add>, %45, %cst_25 [1] : vector<16x8xf32> to vector<16xf32>
    %47 = vector.shape_cast %46 : vector<16xf32> to vector<16x1xf32>
    %cst_26 = arith.constant dense<0.000000e+00> : vector<1x16xf32>
    %48 = tpu.matmul %42, %41, %cst_26 {dimension_numbers = #tpu.dot_dimension_numbers<[1], [1], [0], [0], [0, 0, 1, 0], [], []>} : vector<1x8xf32>, vector<16x8xf32>, vector<1x16xf32> -> vector<1x16xf32>
    %49 = vector.broadcast %47 : vector<16x1xf32> to vector<16x16xf32>
    %50 = vector.broadcast %48 : vector<1x16xf32> to vector<16x16xf32>
    %51 = arith.addf %49, %50 : vector<16x16xf32>
    %cst_27 = arith.constant 0.000000e+00 : f32
    %52 = vector.broadcast %cst_27 : f32 to vector<16x16xf32>
    %53 = arith.cmpf ogt, %51, %52 : vector<16x16xf32>
    %cst_28 = arith.constant 2.000000e-01 : f32
    %54 = vector.broadcast %cst_28 : f32 to vector<16x16xf32>
    %55 = arith.mulf %54, %51 : vector<16x16xf32>
    %56 = arith.select %53, %51, %55 : vector<16x16xi1>, vector<16x16xf32>
    %cst_29 = arith.constant -1.000000e+30 : f32
    %57 = vector.broadcast %cst_29 : f32 to vector<16x16xf32>
    %58 = arith.select %2, %56, %57 : vector<16x16xi1>, vector<16x16xf32>
    %cst_30 = arith.constant dense<0xFF800000> : vector<16xf32>
    %59 = vector.multi_reduction <maximumf>, %58, %cst_30 [1] : vector<16x16xf32> to vector<16xf32>
    %60 = vector.shape_cast %59 : vector<16xf32> to vector<16x1xf32>
    %61 = vector.broadcast %60 : vector<16x1xf32> to vector<16x16xf32>
    %62 = arith.subf %58, %61 : vector<16x16xf32>
    %63 = math.exp %62 : vector<16x16xf32>
    %cst_31 = arith.constant 0.000000e+00 : f32
    %64 = vector.broadcast %cst_31 : f32 to vector<16x16xf32>
    %65 = arith.select %2, %63, %64 : vector<16x16xi1>, vector<16x16xf32>
    %cst_32 = arith.constant dense<0.000000e+00> : vector<16xf32>
    %66 = vector.multi_reduction <add>, %65, %cst_32 [1] : vector<16x16xf32> to vector<16xf32>
    %67 = vector.shape_cast %66 : vector<16xf32> to vector<16x1xf32>
    %68 = vector.broadcast %67 : vector<16x1xf32> to vector<16x16xf32>
    %69 = arith.divf %65, %68 : vector<16x16xf32>
    %cst_33 = arith.constant dense<0.000000e+00> : vector<16x8xf32>
    %70 = tpu.matmul %69, %41, %cst_33 {dimension_numbers = #tpu.dot_dimension_numbers<[1], [0], [0], [1], [0, 0, 1, 1], [], []>} : vector<16x16xf32>, vector<16x8xf32>, vector<16x8xf32> -> vector<16x8xf32>
    %71 = vector.extract_strided_slice %8 {offsets = [0, 16], sizes = [16, 8], strides = [1, 1]} : vector<16x32xf32> to vector<16x8xf32>
    %72 = vector.extract_strided_slice %9 {offsets = [2, 0], sizes = [1, 8], strides = [1, 1]} : vector<4x8xf32> to vector<1x8xf32>
    %73 = vector.extract_strided_slice %10 {offsets = [2, 0], sizes = [1, 8], strides = [1, 1]} : vector<4x8xf32> to vector<1x8xf32>
    %74 = vector.broadcast %73 : vector<1x8xf32> to vector<16x8xf32>
    %75 = arith.mulf %71, %74 : vector<16x8xf32>
    %cst_34 = arith.constant dense<0.000000e+00> : vector<16xf32>
    %76 = vector.multi_reduction <add>, %75, %cst_34 [1] : vector<16x8xf32> to vector<16xf32>
    %77 = vector.shape_cast %76 : vector<16xf32> to vector<16x1xf32>
    %cst_35 = arith.constant dense<0.000000e+00> : vector<1x16xf32>
    %78 = tpu.matmul %72, %71, %cst_35 {dimension_numbers = #tpu.dot_dimension_numbers<[1], [1], [0], [0], [0, 0, 1, 0], [], []>} : vector<1x8xf32>, vector<16x8xf32>, vector<1x16xf32> -> vector<1x16xf32>
    %79 = vector.broadcast %77 : vector<16x1xf32> to vector<16x16xf32>
    %80 = vector.broadcast %78 : vector<1x16xf32> to vector<16x16xf32>
    %81 = arith.addf %79, %80 : vector<16x16xf32>
    %cst_36 = arith.constant 0.000000e+00 : f32
    %82 = vector.broadcast %cst_36 : f32 to vector<16x16xf32>
    %83 = arith.cmpf ogt, %81, %82 : vector<16x16xf32>
    %cst_37 = arith.constant 2.000000e-01 : f32
    %84 = vector.broadcast %cst_37 : f32 to vector<16x16xf32>
    %85 = arith.mulf %84, %81 : vector<16x16xf32>
    %86 = arith.select %83, %81, %85 : vector<16x16xi1>, vector<16x16xf32>
    %cst_38 = arith.constant -1.000000e+30 : f32
    %87 = vector.broadcast %cst_38 : f32 to vector<16x16xf32>
    %88 = arith.select %2, %86, %87 : vector<16x16xi1>, vector<16x16xf32>
    %cst_39 = arith.constant dense<0xFF800000> : vector<16xf32>
    %89 = vector.multi_reduction <maximumf>, %88, %cst_39 [1] : vector<16x16xf32> to vector<16xf32>
    %90 = vector.shape_cast %89 : vector<16xf32> to vector<16x1xf32>
    %91 = vector.broadcast %90 : vector<16x1xf32> to vector<16x16xf32>
    %92 = arith.subf %88, %91 : vector<16x16xf32>
    %93 = math.exp %92 : vector<16x16xf32>
    %cst_40 = arith.constant 0.000000e+00 : f32
    %94 = vector.broadcast %cst_40 : f32 to vector<16x16xf32>
    %95 = arith.select %2, %93, %94 : vector<16x16xi1>, vector<16x16xf32>
    %cst_41 = arith.constant dense<0.000000e+00> : vector<16xf32>
    %96 = vector.multi_reduction <add>, %95, %cst_41 [1] : vector<16x16xf32> to vector<16xf32>
    %97 = vector.shape_cast %96 : vector<16xf32> to vector<16x1xf32>
    %98 = vector.broadcast %97 : vector<16x1xf32> to vector<16x16xf32>
    %99 = arith.divf %95, %98 : vector<16x16xf32>
    %cst_42 = arith.constant dense<0.000000e+00> : vector<16x8xf32>
    %100 = tpu.matmul %99, %71, %cst_42 {dimension_numbers = #tpu.dot_dimension_numbers<[1], [0], [0], [1], [0, 0, 1, 1], [], []>} : vector<16x16xf32>, vector<16x8xf32>, vector<16x8xf32> -> vector<16x8xf32>
    %101 = vector.extract_strided_slice %8 {offsets = [0, 24], sizes = [16, 8], strides = [1, 1]} : vector<16x32xf32> to vector<16x8xf32>
    %102 = vector.extract_strided_slice %9 {offsets = [3, 0], sizes = [1, 8], strides = [1, 1]} : vector<4x8xf32> to vector<1x8xf32>
    %103 = vector.extract_strided_slice %10 {offsets = [3, 0], sizes = [1, 8], strides = [1, 1]} : vector<4x8xf32> to vector<1x8xf32>
    %104 = vector.broadcast %103 : vector<1x8xf32> to vector<16x8xf32>
    %105 = arith.mulf %101, %104 : vector<16x8xf32>
    %cst_43 = arith.constant dense<0.000000e+00> : vector<16xf32>
    %106 = vector.multi_reduction <add>, %105, %cst_43 [1] : vector<16x8xf32> to vector<16xf32>
    %107 = vector.shape_cast %106 : vector<16xf32> to vector<16x1xf32>
    %cst_44 = arith.constant dense<0.000000e+00> : vector<1x16xf32>
    %108 = tpu.matmul %102, %101, %cst_44 {dimension_numbers = #tpu.dot_dimension_numbers<[1], [1], [0], [0], [0, 0, 1, 0], [], []>} : vector<1x8xf32>, vector<16x8xf32>, vector<1x16xf32> -> vector<1x16xf32>
    %109 = vector.broadcast %107 : vector<16x1xf32> to vector<16x16xf32>
    %110 = vector.broadcast %108 : vector<1x16xf32> to vector<16x16xf32>
    %111 = arith.addf %109, %110 : vector<16x16xf32>
    %cst_45 = arith.constant 0.000000e+00 : f32
    %112 = vector.broadcast %cst_45 : f32 to vector<16x16xf32>
    %113 = arith.cmpf ogt, %111, %112 : vector<16x16xf32>
    %cst_46 = arith.constant 2.000000e-01 : f32
    %114 = vector.broadcast %cst_46 : f32 to vector<16x16xf32>
    %115 = arith.mulf %114, %111 : vector<16x16xf32>
    %116 = arith.select %113, %111, %115 : vector<16x16xi1>, vector<16x16xf32>
    %cst_47 = arith.constant -1.000000e+30 : f32
    %117 = vector.broadcast %cst_47 : f32 to vector<16x16xf32>
    %118 = arith.select %2, %116, %117 : vector<16x16xi1>, vector<16x16xf32>
    %cst_48 = arith.constant dense<0xFF800000> : vector<16xf32>
    %119 = vector.multi_reduction <maximumf>, %118, %cst_48 [1] : vector<16x16xf32> to vector<16xf32>
    %120 = vector.shape_cast %119 : vector<16xf32> to vector<16x1xf32>
    %121 = vector.broadcast %120 : vector<16x1xf32> to vector<16x16xf32>
    %122 = arith.subf %118, %121 : vector<16x16xf32>
    %123 = math.exp %122 : vector<16x16xf32>
    %cst_49 = arith.constant 0.000000e+00 : f32
    %124 = vector.broadcast %cst_49 : f32 to vector<16x16xf32>
    %125 = arith.select %2, %123, %124 : vector<16x16xi1>, vector<16x16xf32>
    %cst_50 = arith.constant dense<0.000000e+00> : vector<16xf32>
    %126 = vector.multi_reduction <add>, %125, %cst_50 [1] : vector<16x16xf32> to vector<16xf32>
    %127 = vector.shape_cast %126 : vector<16xf32> to vector<16x1xf32>
    %128 = vector.broadcast %127 : vector<16x1xf32> to vector<16x16xf32>
    %129 = arith.divf %125, %128 : vector<16x16xf32>
    %cst_51 = arith.constant dense<0.000000e+00> : vector<16x8xf32>
    %130 = tpu.matmul %129, %101, %cst_51 {dimension_numbers = #tpu.dot_dimension_numbers<[1], [0], [0], [1], [0, 0, 1, 1], [], []>} : vector<16x16xf32>, vector<16x8xf32>, vector<16x8xf32> -> vector<16x8xf32>
    %cst_52 = arith.constant 0.000000e+00 : f32
    %131 = vector.broadcast %cst_52 : f32 to vector<16x16xf32>
    %132 = vector.extract_strided_slice %4 {offsets = [0, 0], sizes = [1, 8], strides = [1, 1]} : vector<1x32xf32> to vector<1x8xf32>
    %133 = vector.broadcast %132 : vector<1x8xf32> to vector<16x8xf32>
    %134 = arith.addf %40, %133 : vector<16x8xf32>
    %cst_53 = arith.constant 0.000000e+00 : f32
    %135 = vector.broadcast %cst_53 : f32 to vector<16x8xf32>
    %136 = arith.cmpf ogt, %134, %135 : vector<16x8xf32>
    %137 = math.exp %134 : vector<16x8xf32>
    %cst_54 = arith.constant 1.000000e+00 : f32
    %138 = vector.broadcast %cst_54 : f32 to vector<16x8xf32>
    %139 = arith.subf %137, %138 : vector<16x8xf32>
    %140 = arith.select %136, %134, %139 : vector<16x8xi1>, vector<16x8xf32>
    %141 = vector.extract_strided_slice %6 {offsets = [0, 0], sizes = [8, 16], strides = [1, 1]} : vector<32x16xf32> to vector<8x16xf32>
    %cst_55 = arith.constant dense<0.000000e+00> : vector<16x16xf32>
    %142 = tpu.matmul %140, %141, %cst_55 {dimension_numbers = #tpu.dot_dimension_numbers<[1], [0], [0], [1], [0, 0, 1, 1], [], []>} : vector<16x8xf32>, vector<8x16xf32>, vector<16x16xf32> -> vector<16x16xf32>
    %143 = arith.addf %131, %142 : vector<16x16xf32>
    %144 = vector.extract_strided_slice %4 {offsets = [0, 8], sizes = [1, 8], strides = [1, 1]} : vector<1x32xf32> to vector<1x8xf32>
    %145 = vector.broadcast %144 : vector<1x8xf32> to vector<16x8xf32>
    %146 = arith.addf %70, %145 : vector<16x8xf32>
    %cst_56 = arith.constant 0.000000e+00 : f32
    %147 = vector.broadcast %cst_56 : f32 to vector<16x8xf32>
    %148 = arith.cmpf ogt, %146, %147 : vector<16x8xf32>
    %149 = math.exp %146 : vector<16x8xf32>
    %cst_57 = arith.constant 1.000000e+00 : f32
    %150 = vector.broadcast %cst_57 : f32 to vector<16x8xf32>
    %151 = arith.subf %149, %150 : vector<16x8xf32>
    %152 = arith.select %148, %146, %151 : vector<16x8xi1>, vector<16x8xf32>
    %153 = vector.extract_strided_slice %6 {offsets = [8, 0], sizes = [8, 16], strides = [1, 1]} : vector<32x16xf32> to vector<8x16xf32>
    %cst_58 = arith.constant dense<0.000000e+00> : vector<16x16xf32>
    %154 = tpu.matmul %152, %153, %cst_58 {dimension_numbers = #tpu.dot_dimension_numbers<[1], [0], [0], [1], [0, 0, 1, 1], [], []>} : vector<16x8xf32>, vector<8x16xf32>, vector<16x16xf32> -> vector<16x16xf32>
    %155 = arith.addf %143, %154 : vector<16x16xf32>
    %156 = vector.extract_strided_slice %4 {offsets = [0, 16], sizes = [1, 8], strides = [1, 1]} : vector<1x32xf32> to vector<1x8xf32>
    %157 = vector.broadcast %156 : vector<1x8xf32> to vector<16x8xf32>
    %158 = arith.addf %100, %157 : vector<16x8xf32>
    %cst_59 = arith.constant 0.000000e+00 : f32
    %159 = vector.broadcast %cst_59 : f32 to vector<16x8xf32>
    %160 = arith.cmpf ogt, %158, %159 : vector<16x8xf32>
    %161 = math.exp %158 : vector<16x8xf32>
    %cst_60 = arith.constant 1.000000e+00 : f32
    %162 = vector.broadcast %cst_60 : f32 to vector<16x8xf32>
    %163 = arith.subf %161, %162 : vector<16x8xf32>
    %164 = arith.select %160, %158, %163 : vector<16x8xi1>, vector<16x8xf32>
    %165 = vector.extract_strided_slice %6 {offsets = [16, 0], sizes = [8, 16], strides = [1, 1]} : vector<32x16xf32> to vector<8x16xf32>
    %cst_61 = arith.constant dense<0.000000e+00> : vector<16x16xf32>
    %166 = tpu.matmul %164, %165, %cst_61 {dimension_numbers = #tpu.dot_dimension_numbers<[1], [0], [0], [1], [0, 0, 1, 1], [], []>} : vector<16x8xf32>, vector<8x16xf32>, vector<16x16xf32> -> vector<16x16xf32>
    %167 = arith.addf %155, %166 : vector<16x16xf32>
    %168 = vector.extract_strided_slice %4 {offsets = [0, 24], sizes = [1, 8], strides = [1, 1]} : vector<1x32xf32> to vector<1x8xf32>
    %169 = vector.broadcast %168 : vector<1x8xf32> to vector<16x8xf32>
    %170 = arith.addf %130, %169 : vector<16x8xf32>
    %cst_62 = arith.constant 0.000000e+00 : f32
    %171 = vector.broadcast %cst_62 : f32 to vector<16x8xf32>
    %172 = arith.cmpf ogt, %170, %171 : vector<16x8xf32>
    %173 = math.exp %170 : vector<16x8xf32>
    %cst_63 = arith.constant 1.000000e+00 : f32
    %174 = vector.broadcast %cst_63 : f32 to vector<16x8xf32>
    %175 = arith.subf %173, %174 : vector<16x8xf32>
    %176 = arith.select %172, %170, %175 : vector<16x8xi1>, vector<16x8xf32>
    %177 = vector.extract_strided_slice %6 {offsets = [24, 0], sizes = [8, 16], strides = [1, 1]} : vector<32x16xf32> to vector<8x16xf32>
    %cst_64 = arith.constant dense<0.000000e+00> : vector<16x16xf32>
    %178 = tpu.matmul %176, %177, %cst_64 {dimension_numbers = #tpu.dot_dimension_numbers<[1], [0], [0], [1], [0, 0, 1, 1], [], []>} : vector<16x8xf32>, vector<8x16xf32>, vector<16x16xf32> -> vector<16x16xf32>
    %179 = arith.addf %167, %178 : vector<16x16xf32>
    %c0_65 = arith.constant 0 : index
    %c0_66 = arith.constant 0 : index
    %180 = vector.load %arg7[%c0_65, %c0_66] : memref<2x8xf32, #tpu.memory_space<vmem>>, vector<2x8xf32>
    %c0_67 = arith.constant 0 : index
    %c0_68 = arith.constant 0 : index
    %181 = vector.load %arg8[%c0_67, %c0_68] : memref<2x8xf32, #tpu.memory_space<vmem>>, vector<2x8xf32>
    %182 = vector.extract_strided_slice %179 {offsets = [0, 0], sizes = [16, 8], strides = [1, 1]} : vector<16x16xf32> to vector<16x8xf32>
    %183 = vector.extract_strided_slice %180 {offsets = [0, 0], sizes = [1, 8], strides = [1, 1]} : vector<2x8xf32> to vector<1x8xf32>
    %184 = vector.extract_strided_slice %181 {offsets = [0, 0], sizes = [1, 8], strides = [1, 1]} : vector<2x8xf32> to vector<1x8xf32>
    %185 = vector.broadcast %184 : vector<1x8xf32> to vector<16x8xf32>
    %186 = arith.mulf %182, %185 : vector<16x8xf32>
    %cst_69 = arith.constant dense<0.000000e+00> : vector<16xf32>
    %187 = vector.multi_reduction <add>, %186, %cst_69 [1] : vector<16x8xf32> to vector<16xf32>
    %188 = vector.shape_cast %187 : vector<16xf32> to vector<16x1xf32>
    %cst_70 = arith.constant dense<0.000000e+00> : vector<1x16xf32>
    %189 = tpu.matmul %183, %182, %cst_70 {dimension_numbers = #tpu.dot_dimension_numbers<[1], [1], [0], [0], [0, 0, 1, 0], [], []>} : vector<1x8xf32>, vector<16x8xf32>, vector<1x16xf32> -> vector<1x16xf32>
    %190 = vector.broadcast %188 : vector<16x1xf32> to vector<16x16xf32>
    %191 = vector.broadcast %189 : vector<1x16xf32> to vector<16x16xf32>
    %192 = arith.addf %190, %191 : vector<16x16xf32>
    %cst_71 = arith.constant 0.000000e+00 : f32
    %193 = vector.broadcast %cst_71 : f32 to vector<16x16xf32>
    %194 = arith.cmpf ogt, %192, %193 : vector<16x16xf32>
    %cst_72 = arith.constant 2.000000e-01 : f32
    %195 = vector.broadcast %cst_72 : f32 to vector<16x16xf32>
    %196 = arith.mulf %195, %192 : vector<16x16xf32>
    %197 = arith.select %194, %192, %196 : vector<16x16xi1>, vector<16x16xf32>
    %cst_73 = arith.constant -1.000000e+30 : f32
    %198 = vector.broadcast %cst_73 : f32 to vector<16x16xf32>
    %199 = arith.select %2, %197, %198 : vector<16x16xi1>, vector<16x16xf32>
    %cst_74 = arith.constant dense<0xFF800000> : vector<16xf32>
    %200 = vector.multi_reduction <maximumf>, %199, %cst_74 [1] : vector<16x16xf32> to vector<16xf32>
    %201 = vector.shape_cast %200 : vector<16xf32> to vector<16x1xf32>
    %202 = vector.broadcast %201 : vector<16x1xf32> to vector<16x16xf32>
    %203 = arith.subf %199, %202 : vector<16x16xf32>
    %204 = math.exp %203 : vector<16x16xf32>
    %cst_75 = arith.constant 0.000000e+00 : f32
    %205 = vector.broadcast %cst_75 : f32 to vector<16x16xf32>
    %206 = arith.select %2, %204, %205 : vector<16x16xi1>, vector<16x16xf32>
    %cst_76 = arith.constant dense<0.000000e+00> : vector<16xf32>
    %207 = vector.multi_reduction <add>, %206, %cst_76 [1] : vector<16x16xf32> to vector<16xf32>
    %208 = vector.shape_cast %207 : vector<16xf32> to vector<16x1xf32>
    %209 = vector.broadcast %208 : vector<16x1xf32> to vector<16x16xf32>
    %210 = arith.divf %206, %209 : vector<16x16xf32>
    %cst_77 = arith.constant dense<0.000000e+00> : vector<16x8xf32>
    %211 = tpu.matmul %210, %182, %cst_77 {dimension_numbers = #tpu.dot_dimension_numbers<[1], [0], [0], [1], [0, 0, 1, 1], [], []>} : vector<16x16xf32>, vector<16x8xf32>, vector<16x8xf32> -> vector<16x8xf32>
    %212 = vector.extract_strided_slice %179 {offsets = [0, 8], sizes = [16, 8], strides = [1, 1]} : vector<16x16xf32> to vector<16x8xf32>
    %213 = vector.extract_strided_slice %180 {offsets = [1, 0], sizes = [1, 8], strides = [1, 1]} : vector<2x8xf32> to vector<1x8xf32>
    %214 = vector.extract_strided_slice %181 {offsets = [1, 0], sizes = [1, 8], strides = [1, 1]} : vector<2x8xf32> to vector<1x8xf32>
    %215 = vector.broadcast %214 : vector<1x8xf32> to vector<16x8xf32>
    %216 = arith.mulf %212, %215 : vector<16x8xf32>
    %cst_78 = arith.constant dense<0.000000e+00> : vector<16xf32>
    %217 = vector.multi_reduction <add>, %216, %cst_78 [1] : vector<16x8xf32> to vector<16xf32>
    %218 = vector.shape_cast %217 : vector<16xf32> to vector<16x1xf32>
    %cst_79 = arith.constant dense<0.000000e+00> : vector<1x16xf32>
    %219 = tpu.matmul %213, %212, %cst_79 {dimension_numbers = #tpu.dot_dimension_numbers<[1], [1], [0], [0], [0, 0, 1, 0], [], []>} : vector<1x8xf32>, vector<16x8xf32>, vector<1x16xf32> -> vector<1x16xf32>
    %220 = vector.broadcast %218 : vector<16x1xf32> to vector<16x16xf32>
    %221 = vector.broadcast %219 : vector<1x16xf32> to vector<16x16xf32>
    %222 = arith.addf %220, %221 : vector<16x16xf32>
    %cst_80 = arith.constant 0.000000e+00 : f32
    %223 = vector.broadcast %cst_80 : f32 to vector<16x16xf32>
    %224 = arith.cmpf ogt, %222, %223 : vector<16x16xf32>
    %cst_81 = arith.constant 2.000000e-01 : f32
    %225 = vector.broadcast %cst_81 : f32 to vector<16x16xf32>
    %226 = arith.mulf %225, %222 : vector<16x16xf32>
    %227 = arith.select %224, %222, %226 : vector<16x16xi1>, vector<16x16xf32>
    %cst_82 = arith.constant -1.000000e+30 : f32
    %228 = vector.broadcast %cst_82 : f32 to vector<16x16xf32>
    %229 = arith.select %2, %227, %228 : vector<16x16xi1>, vector<16x16xf32>
    %cst_83 = arith.constant dense<0xFF800000> : vector<16xf32>
    %230 = vector.multi_reduction <maximumf>, %229, %cst_83 [1] : vector<16x16xf32> to vector<16xf32>
    %231 = vector.shape_cast %230 : vector<16xf32> to vector<16x1xf32>
    %232 = vector.broadcast %231 : vector<16x1xf32> to vector<16x16xf32>
    %233 = arith.subf %229, %232 : vector<16x16xf32>
    %234 = math.exp %233 : vector<16x16xf32>
    %cst_84 = arith.constant 0.000000e+00 : f32
    %235 = vector.broadcast %cst_84 : f32 to vector<16x16xf32>
    %236 = arith.select %2, %234, %235 : vector<16x16xi1>, vector<16x16xf32>
    %cst_85 = arith.constant dense<0.000000e+00> : vector<16xf32>
    %237 = vector.multi_reduction <add>, %236, %cst_85 [1] : vector<16x16xf32> to vector<16xf32>
    %238 = vector.shape_cast %237 : vector<16xf32> to vector<16x1xf32>
    %239 = vector.broadcast %238 : vector<16x1xf32> to vector<16x16xf32>
    %240 = arith.divf %236, %239 : vector<16x16xf32>
    %cst_86 = arith.constant dense<0.000000e+00> : vector<16x8xf32>
    %241 = tpu.matmul %240, %212, %cst_86 {dimension_numbers = #tpu.dot_dimension_numbers<[1], [0], [0], [1], [0, 0, 1, 1], [], []>} : vector<16x16xf32>, vector<16x8xf32>, vector<16x8xf32> -> vector<16x8xf32>
    %cst_87 = arith.constant 0.000000e+00 : f32
    %242 = vector.broadcast %cst_87 : f32 to vector<16x8xf32>
    %243 = arith.addf %242, %211 : vector<16x8xf32>
    %244 = vector.extract_strided_slice %5 {offsets = [0, 0], sizes = [1, 8], strides = [1, 1]} : vector<1x16xf32> to vector<1x8xf32>
    %245 = vector.broadcast %244 : vector<1x8xf32> to vector<16x8xf32>
    %246 = arith.addf %243, %245 : vector<16x8xf32>
    %247 = arith.addf %246, %241 : vector<16x8xf32>
    %248 = vector.extract_strided_slice %5 {offsets = [0, 8], sizes = [1, 8], strides = [1, 1]} : vector<1x16xf32> to vector<1x8xf32>
    %249 = vector.broadcast %248 : vector<1x8xf32> to vector<16x8xf32>
    %250 = arith.addf %247, %249 : vector<16x8xf32>
    %cst_88 = arith.constant 5.000000e-01 : f32
    %251 = vector.broadcast %cst_88 : f32 to vector<16x8xf32>
    %252 = arith.mulf %250, %251 : vector<16x8xf32>
    %c0_89 = arith.constant 0 : index
    %c0_90 = arith.constant 0 : index
    %253 = vector.load %arg10[%c0_89, %c0_90] : memref<16x8xf32, #tpu.memory_space<vmem>>, vector<16x8xf32>
    tpu.vector_store %arg10[%c0_89, %c0_90], %252 {strides = array<i32>} : memref<16x8xf32, #tpu.memory_space<vmem>>, vector<16x8xf32>,
    return
  }
}

</mosaic_0001>

<llo_original>
// kernel: tpu_custom_call.1
$region0: #{tpu_custom_call.1}
  #allocation0 [shape = 'u32[]', space=smem, size = 0x4, offset = 0x4, fixed_abs, tag = 'smem constant byte address 0x4 - core index']
  #allocation1 [shape = 'u32[72,128]{1,0:T(1,128)}', space=vmem, size = 0x9000, scoped, tag = 'internal scratch']
  %s0 = inlined_call_operand.vmem [shape: f32[16,16], index: 0, kind: input, shape index: {}]
  %s1 = inlined_call_operand.hbm [shape: f32[16,32], index: 1, kind: input, shape index: {}]
  %s2 = inlined_call_operand.vmem [shape: f32[32,32], index: 2, kind: input, shape index: {}]
  %s3 = inlined_call_operand.hbm [shape: f32[4,8], index: 3, kind: input, shape index: {}]
  %s4 = inlined_call_operand.hbm [shape: f32[4,8], index: 4, kind: input, shape index: {}]
  %s5 = inlined_call_operand.hbm [shape: f32[1,32], index: 5, kind: input, shape index: {}]
  %s6 = inlined_call_operand.vmem [shape: f32[32,16], index: 6, kind: input, shape index: {}]
  %s7 = inlined_call_operand.vmem [shape: f32[2,8], index: 7, kind: input, shape index: {}]
  %s8 = inlined_call_operand.vmem [shape: f32[2,8], index: 8, kind: input, shape index: {}]
  %s9 = inlined_call_operand.vmem [shape: f32[1,16], index: 9, kind: input, shape index: {}]
  %s10 = inlined_call_operand.vmem [shape: f32[16,8], index: 10, kind: output, shape index: {}]
  %s11 = sld [smem:[#allocation0]]
  $region66: #{tpu_custom_call.1} parent=0
    _
  %s13 = ssub.s32 1, %s11
  %s14 = scalar_select 0, %s13, %s11
  $region1: #{tpu_custom_call.1} parent=0
    #allocation2 [shape = 'u8[8192]{0}', space=vmem, size = 0x2000, scoped, tag = 'input window, operand 1, single buffered']
    #allocation3 [shape = 's32[1]{0}', space=sflag, size = 0x4, scoped, tag = 'scoped memory for tpu_custom_call.1']
    #allocation4 [shape = 'u8[2048]{0}', space=vmem, size = 0x800, scoped, tag = 'input window, operand 3, single buffered']
    #allocation5 [shape = 's32[1]{0}', space=sflag, size = 0x4, scoped, tag = 'scoped memory for tpu_custom_call.1']
    #allocation6 [shape = 'u8[2048]{0}', space=vmem, size = 0x800, scoped, tag = 'input window, operand 4, single buffered']
    #allocation7 [shape = 'u8[512]{0}', space=vmem, size = 0x400, scoped, tag = 'input window, operand 5, single buffered']
    #allocation8 [shape = 's32[1]{0}', space=sflag, size = 0x4, scoped, tag = 'scoped memory for tpu_custom_call.1']
    %15 = vsyncpa [#allocation3], 0
    %16 = vsyncpa [#allocation5], 0
    %17 = vsyncpa [#allocation8], 0
    // Predicated region
    $region2: #{tpu_custom_call.1} parent=1 // pred_check
      _
    $region3: #{tpu_custom_call.1} parent=1 // pred_check_branch
      %19 = sbr.rel (0) target = $region5
    $region4: #{tpu_custom_call.1} parent=1 // pred_region
      _
    $region5: #{tpu_custom_call.1} parent=1 // pred_fallthru
      _
    // Predicated region
    $region6: #{tpu_custom_call.1} parent=1 // pred_check
      _
    $region7: #{tpu_custom_call.1} parent=1 // pred_check_branch
      %21 = sbr.rel (0) target = $region9
    $region8: #{tpu_custom_call.1} parent=1 // pred_region
      %23 = vsyncadd [#allocation3], 0
      %s24 = sshll.u32 %s1, 4
      %s25 = int_to_ptr.hbm [resolvable:$true] %s24
      %s26 = sshll.u32 [#allocation2], 4
      %s27 = int_to_ptr.vmem [resolvable:$true] %s26
      %32 = dma.hbm_to_vmem [thread:$0]  %s25, 256, %s27, [#allocation3], 128, 128, 8
    $region9: #{tpu_custom_call.1} parent=1 // pred_fallthru
      _
    // Predicated region
    $region10: #{tpu_custom_call.1} parent=1 // pred_check
      _
    $region11: #{tpu_custom_call.1} parent=1 // pred_check_branch
      %34 = sbr.rel (0) target = $region13
    $region12: #{tpu_custom_call.1} parent=1 // pred_region
      _
    $region13: #{tpu_custom_call.1} parent=1 // pred_fallthru
      _
    // Predicated region
    $region14: #{tpu_custom_call.1} parent=1 // pred_check
      _
    $region15: #{tpu_custom_call.1} parent=1 // pred_check_branch
      %36 = sbr.rel (0) target = $region17
    $region16: #{tpu_custom_call.1} parent=1 // pred_region
      %38 = vsyncadd [#allocation5], 0
      %s40 = sshll.u32 %s3, 4
      %s41 = int_to_ptr.hbm [resolvable:$true] %s40
      %s42 = sshll.u32 [#allocation4], 4
      %s43 = int_to_ptr.vmem [resolvable:$true] %s42
      %45 = dma.hbm_to_vmem [thread:$0]  %s41, 64, %s43, [#allocation5]
    $region17: #{tpu_custom_call.1} parent=1 // pred_fallthru
      _
    // Predicated region
    $region18: #{tpu_custom_call.1} parent=1 // pred_check
      _
    $region19: #{tpu_custom_call.1} parent=1 // pred_check_branch
      %47 = sbr.rel (0) target = $region21
    $region20: #{tpu_custom_call.1} parent=1 // pred_region
      %49 = vsyncadd [#allocation5], 0
      %s51 = sshll.u32 %s4, 4
      %s52 = int_to_ptr.hbm [resolvable:$true] %s51
      %s53 = sshll.u32 [#allocation6], 4
      %s54 = int_to_ptr.vmem [resolvable:$true] %s53
      %56 = dma.hbm_to_vmem [thread:$0]  %s52, 64, %s54, [#allocation5]
    $region21: #{tpu_custom_call.1} parent=1 // pred_fallthru
      _
    // Predicated region
    $region22: #{tpu_custom_call.1} parent=1 // pred_check
      _
    $region23: #{tpu_custom_call.1} parent=1 // pred_check_branch
      %58 = sbr.rel (0) target = $region25
    $region24: #{tpu_custom_call.1} parent=1 // pred_region
      %60 = vsyncadd [#allocation8], 0
      %s62 = sshll.u32 %s5, 4
      %s63 = int_to_ptr.hbm [resolvable:$true] %s62
      %s64 = sshll.u32 [#allocation7], 4
      %s65 = int_to_ptr.vmem [resolvable:$true] %s64
      %67 = dma.hbm_to_vmem [thread:$0]  %s63, 16, %s65, [#allocation8]
    $region25: #{tpu_custom_call.1} parent=1 // pred_fallthru
      _
    // Predicated region
    $region26: #{tpu_custom_call.1} parent=1 // pred_check
      _
    $region27: #{tpu_custom_call.1} parent=1 // pred_check_branch
      %69 = sbr.rel (0) target = $region29
    $region28: #{tpu_custom_call.1} parent=1 // pred_region
      _
    $region29: #{tpu_custom_call.1} parent=1 // pred_fallthru
      _
    // Predicated region
    $region30: #{tpu_custom_call.1} parent=1 // pred_check
      _
    $region31: #{tpu_custom_call.1} parent=1 // pred_check_branch
      %71 = sbr.rel (0) target = $region33
    $region32: #{tpu_custom_call.1} parent=1 // pred_region
      _
    $region33: #{tpu_custom_call.1} parent=1 // pred_fallthru
      _
    // Predicated region
    $region34: #{tpu_custom_call.1} parent=1 // pred_check
      _
    $region35: #{tpu_custom_call.1} parent=1 // pred_check_branch
      %73 = sbr.rel (0) target = $region37
    $region36: #{tpu_custom_call.1} parent=1 // pred_region
      _
    $region37: #{tpu_custom_call.1} parent=1 // pred_fallthru
      _
    // Predicated region
    $region38: #{tpu_custom_call.1} parent=1 // pred_check
      _
    $region39: #{tpu_custom_call.1} parent=1 // pred_check_branch
      %75 = sbr.rel (0) target = $region41
    $region40: #{tpu_custom_call.1} parent=1 // pred_region
      _
    $region41: #{tpu_custom_call.1} parent=1 // pred_fallthru
      _
    // Predicated region
    $region42: #{tpu_custom_call.1} parent=1 // pred_check
      _
    $region43: #{tpu_custom_call.1} parent=1 // pred_check_branch
      %77 = sbr.rel (0) target = $region45
    $region44: #{tpu_custom_call.1} parent=1 // pred_region
      %79 = dma.done [#allocation3], 256
    $region45: #{tpu_custom_call.1} parent=1 // pred_fallthru
      _
    // Predicated region
    $region46: #{tpu_custom_call.1} parent=1 // pred_check
      _
    $region47: #{tpu_custom_call.1} parent=1 // pred_check_branch
      %81 = sbr.rel (0) target = $region49
    $region48: #{tpu_custom_call.1} parent=1 // pred_region
      %83 = dma.done [#allocation5], 64
    $region49: #{tpu_custom_call.1} parent=1 // pred_fallthru
      _
    // Predicated region
    $region50: #{tpu_custom_call.1} parent=1 // pred_check
      _
    $region51: #{tpu_custom_call.1} parent=1 // pred_check_branch
      %85 = sbr.rel (0) target = $region53
    $region52: #{tpu_custom_call.1} parent=1 // pred_region
      %87 = dma.done [#allocation5], 64
    $region53: #{tpu_custom_call.1} parent=1 // pred_fallthru
      _
    // Predicated region
    $region54: #{tpu_custom_call.1} parent=1 // pred_check
      _
    $region55: #{tpu_custom_call.1} parent=1 // pred_check_branch
      %89 = sbr.rel (0) target = $region57
    $region56: #{tpu_custom_call.1} parent=1 // pred_region
      %91 = dma.done [#allocation8], 16
    $region57: #{tpu_custom_call.1} parent=1 // pred_fallthru
      _
    %v92 = vld [vmem:[%s0] sm:$0xff]
    %v93 = vld [vmem:[%s0 + $0x8] sm:$0xff]
    %vm94 = vcmp.gt.f32.partialorder %v92, 0.0
    %vm95 = vcmp.gt.f32.partialorder %v93, 0.0
    %v96 = vld [vmem:[#allocation2] sm:$0xff]
    %v97 = vld [vmem:[#allocation2 + $0x8] sm:$0xff]
    %v98 = vld [vmem:[#allocation7] sm:$0x1]
    %v99 = vld [vmem:[%s9] sm:$0x1]
    %v100 = vld [vmem:[%s6] sm:$0xff]
    %v101 = vld [vmem:[%s6 + $0x8] sm:$0xff]
    %v102 = vld [vmem:[%s6 + $0x10] sm:$0xff]
    %v103 = vld [vmem:[%s6 + $0x18] sm:$0xff]
    %v104 = vld [vmem:[%s2] sm:$0xff]
    %v105 = vld [vmem:[%s2 + $0x8] sm:$0xff]
    %v106 = vld [vmem:[%s2 + $0x10] sm:$0xff]
    %v107 = vld [vmem:[%s2 + $0x18] sm:$0xff]
    %vm108 = vcmask 261120
    %v110 = vsel %vm108, %v96, 0
    %v113 = vsel %vm108, %v97, 0
    %115 = vmatpush.msra.mxu0 0.0
    %116 = vmatpush.msra.mxu0 0.0
    %117 = vmatpush.msra.mxu0 0.0
    %118 = vmatpush.msra.mxu0 0.0
    %119 = vmatpush.msra.mxu0 0.0
    %120 = vmatpush.msra.mxu0 0.0
    %121 = vmatpush.msra.mxu0 0.0
    %122 = vmatpush.msra.mxu0 0.0
    %123 = vmatpush.msra.mxu0 0.0
    %124 = vmatpush.msra.mxu0 0.0
    %125 = vmatpush.msra.mxu0 0.0
    %126 = vmatpush.msra.mxu0 0.0
    %127 = vmatpush.msra.mxu0 %v107
    %128 = vmatpush.msra.mxu0 %v106
    %129 = vmatpush.msra.mxu0 %v105
    %130 = vmatpush.msra.mxu0 %v104
    %131 = vmatmul.f32.gmra.mxu0 %v110
    %v132 = vpop.f32.mrf.mxu0
    %v133 = vadd.f32 0.0, %v132
    %134 = vmatmul.f32.gmra.mxu0 %v113
    %v135 = vpop.f32.mrf.mxu0
    %v136 = vadd.f32 0.0, %v135
    %137 = vdwg.mxu0
    %v138 = vld [vmem:[#allocation4] sm:$0xf]
    %v139 = vld [vmem:[#allocation6] sm:$0xf]
    %v140 = vperm.slane %v139, 0
    %v141 = vmul.f32 %v133, %v140
    %v142 = vmul.f32 %v136, %v140
    %vm143 = vcmask 64512
    %v144 = vsel %vm143, %v141, 0.0
    %145 = vadd.xlane.f32.xlu0 %v144
    %v146 = vpop.xlane.xlu0 %145
    %v147 = vsel %vm143, %v142, 0.0
    %148 = vadd.xlane.f32.xlu0 %v147
    %v149 = vpop.xlane.xlu0 %148
    %v151 = vsel %vm143, %v138, 0
    %v154 = vsel %vm143, %v133, 0
    %v157 = vsel %vm143, %v136, 0
    %159 = vmatpush.xpose.msra.mxu0 0.0
    %160 = vmatpush.xpose.msra.mxu0 0.0
    %161 = vmatpush.xpose.msra.mxu0 0.0
    %162 = vmatpush.xpose.msra.mxu0 0.0
    %163 = vmatpush.xpose.msra.mxu0 0.0
    %164 = vmatpush.xpose.msra.mxu0 0.0
    %165 = vmatpush.xpose.msra.mxu0 0.0
    %166 = vmatpush.xpose.msra.mxu0 0.0
    %167 = vmatpush.xpose.msra.mxu0 0.0
    %168 = vmatpush.xpose.msra.mxu0 0.0
    %169 = vmatpush.xpose.msra.mxu0 0.0
    %170 = vmatpush.xpose.msra.mxu0 0.0
    %171 = vmatpush.xpose.msra.mxu0 0.0
    %172 = vmatpush.xpose.msra.mxu0 0.0
    %173 = vmatpush.xpose.msra.mxu0 %v157
    %174 = vmatpush.xpose.msra.mxu0 %v154
    %175 = vmatmul.f32.gmra.mxu0 %v151
    %v176 = vpop.f32.mrf.mxu0
    %v177 = vadd.f32 0.0, %v176
    %178 = vdwg.mxu0
    %v179 = vperm.slane %v177, 0
    %v180 = vadd.f32 %v146, %v179
    %v181 = vadd.f32 %v149, %v179
    %vm182 = vcmp.gt.f32.partialorder %v180, 0.0
    %vm183 = vcmp.gt.f32.partialorder %v181, 0.0
    %v184 = vmul.f32 %v180, 0.2
    %v185 = vmul.f32 %v181, 0.2
    %v186 = vsel %vm182, %v180, %v184
    %v187 = vsel %vm183, %v181, %v185
    %v188 = vsel %vm94, %v186, -1e+30
    %v189 = vsel %vm95, %v187, -1e+30
    %vm190 = vcmask 130048
    %v191 = vsel %vm190, %v188, -inf
    %192 = vmax.xlane.f32.xlu0 %v191
    %v193 = vpop.xlane.xlu0 %192
    %v194 = vsel %vm190, %v189, -inf
    %195 = vmax.xlane.f32.xlu0 %v194
    %v196 = vpop.xlane.xlu0 %195
    %v197 = vsub.f32 %v188, %v193
    %v198 = vsub.f32 %v189, %v196
    %v199 = vmul.f32 %v197, 1.442695
    %v200 = vpow.pop %v199
    %v201 = vmul.f32 %v198, 1.442695
    %v202 = vpow.pop %v201
    %v203 = vsel %vm94, %v200, 0.0
    %v204 = vsel %vm95, %v202, 0.0
    %v205 = vsel %vm190, %v203, 0.0
    %206 = vadd.xlane.f32.xlu0 %v205
    %v207 = vpop.xlane.xlu0 %206
    %v208 = vsel %vm190, %v204, 0.0
    %209 = vadd.xlane.f32.xlu0 %v208
    %v210 = vpop.xlane.xlu0 %209
    %v211 = vrcp.pop %v207
    %v212 = vmul.f32 %v207, %v211
    %v213 = vsub.f32 1.0, %v212
    %v214 = vmul.f32 %v211, %v213
    %v215 = vadd.f32 %v211, %v214
    %vm216 = vweird.f32 %v207
    %vm217 = vweird.f32 %v211
    %vm218 = vmor %vm216, %vm217
    %v219 = vsel %vm218, %v211, %v215
    %v220 = vand.u32 2147483647, %v207
    %vm221 = vcmp.eq.f32.partialorder %v220, 8.507059e+37
    %v222 = vand.u32 %v207, 2147483648
    %v223 = vor.u32 1.1754944e-38, %v222
    %v224 = vsel %vm221, %v223, %v219
    %v225 = vmul.f32 %v203, %v224
    %v226 = vrcp.pop %v210
    %v227 = vmul.f32 %v210, %v226
    %v228 = vsub.f32 1.0, %v227
    %v229 = vmul.f32 %v226, %v228
    %v230 = vadd.f32 %v226, %v229
    %vm231 = vweird.f32 %v210
    %vm232 = vweird.f32 %v226
    %vm233 = vmor %vm231, %vm232
    %v234 = vsel %vm233, %v226, %v230
    %v235 = vand.u32 2147483647, %v210
    %vm236 = vcmp.eq.f32.partialorder %v235, 8.507059e+37
    %v237 = vand.u32 %v210, 2147483648
    %v238 = vor.u32 1.1754944e-38, %v237
    %v239 = vsel %vm236, %v238, %v234
    %v240 = vmul.f32 %v204, %v239
    %v241 = vperm.slane %v139, 1
    %243 = vrot.lane.b32.xlu0 %v241, 8
    %v244 = vpop.permute.xlu0 %243
    %v246 = vmul.f32 %v133, %v244
    %v247 = vmul.f32 %v136, %v244
    %250 = vrot.lane.b32.xlu0 %v246, 120
    %v251 = vpop.permute.xlu0 %250
    %252 = vrot.lane.b32.xlu0 %v247, 120
    %v253 = vpop.permute.xlu0 %252
    %v256 = vsel %vm143, %v251, 0.0
    %257 = vadd.xlane.f32.xlu0 %v256
    %v258 = vpop.xlane.xlu0 %257
    %v259 = vsel %vm143, %v253, 0.0
    %260 = vadd.xlane.f32.xlu0 %v259
    %v261 = vpop.xlane.xlu0 %260
    %v262 = vrot.slane %v138, 1
    %263 = vrot.lane.b32.xlu0 %v133, 120
    %v264 = vpop.permute.xlu0 %263
    %265 = vrot.lane.b32.xlu0 %v136, 120
    %v266 = vpop.permute.xlu0 %265
    %v267 = vsel %vm143, %v262, 0
    %v269 = vsel %vm143, %v264, 0
    %v271 = vsel %vm143, %v266, 0
    %273 = vmatpush.xpose.msra.mxu0 0.0
    %274 = vmatpush.xpose.msra.mxu0 0.0
    %275 = vmatpush.xpose.msra.mxu0 0.0
    %276 = vmatpush.xpose.msra.mxu0 0.0
    %277 = vmatpush.xpose.msra.mxu0 0.0
    %278 = vmatpush.xpose.msra.mxu0 0.0
    %279 = vmatpush.xpose.msra.mxu0 0.0
    %280 = vmatpush.xpose.msra.mxu0 0.0
    %281 = vmatpush.xpose.msra.mxu0 0.0
    %282 = vmatpush.xpose.msra.mxu0 0.0
    %283 = vmatpush.xpose.msra.mxu0 0.0
    %284 = vmatpush.xpose.msra.mxu0 0.0
    %285 = vmatpush.xpose.msra.mxu0 0.0
    %286 = vmatpush.xpose.msra.mxu0 0.0
    %287 = vmatpush.xpose.msra.mxu0 %v271
    %288 = vmatpush.xpose.msra.mxu0 %v269
    %289 = vmatmul.f32.gmra.mxu0 %v267
    %v290 = vpop.f32.mrf.mxu0
    %v291 = vadd.f32 0.0, %v290
    %292 = vdwg.mxu0
    %v293 = vperm.slane %v291, 0
    %v294 = vadd.f32 %v258, %v293
    %v295 = vadd.f32 %v261, %v293
    %vm296 = vcmp.gt.f32.partialorder %v294, 0.0
    %vm297 = vcmp.gt.f32.partialorder %v295, 0.0
    %v298 = vmul.f32 %v294, 0.2
    %v299 = vmul.f32 %v295, 0.2
    %v300 = vsel %vm296, %v294, %v298
    %v301 = vsel %vm297, %v295, %v299
    %v302 = vsel %vm94, %v300, -1e+30
    %v303 = vsel %vm95, %v301, -1e+30
    %v304 = vsel %vm190, %v302, -inf
    %305 = vmax.xlane.f32.xlu0 %v304
    %v306 = vpop.xlane.xlu0 %305
    %v307 = vsel %vm190, %v303, -inf
    %308 = vmax.xlane.f32.xlu0 %v307
    %v309 = vpop.xlane.xlu0 %308
    %v310 = vsub.f32 %v302, %v306
    %v311 = vsub.f32 %v303, %v309
    %v312 = vmul.f32 %v310, 1.442695
    %v313 = vpow.pop %v312
    %v314 = vmul.f32 %v311, 1.442695
    %v315 = vpow.pop %v314
    %v316 = vsel %vm94, %v313, 0.0
    %v317 = vsel %vm95, %v315, 0.0
    %v318 = vsel %vm190, %v316, 0.0
    %319 = vadd.xlane.f32.xlu0 %v318
    %v320 = vpop.xlane.xlu0 %319
    %v321 = vsel %vm190, %v317, 0.0
    %322 = vadd.xlane.f32.xlu0 %v321
    %v323 = vpop.xlane.xlu0 %322
    %v324 = vrcp.pop %v320
    %v325 = vmul.f32 %v320, %v324
    %v326 = vsub.f32 1.0, %v325
    %v327 = vmul.f32 %v324, %v326
    %v328 = vadd.f32 %v324, %v327
    %vm329 = vweird.f32 %v320
    %vm330 = vweird.f32 %v324
    %vm331 = vmor %vm329, %vm330
    %v332 = vsel %vm331, %v324, %v328
    %v333 = vand.u32 2147483647, %v320
    %vm334 = vcmp.eq.f32.partialorder %v333, 8.507059e+37
    %v335 = vand.u32 %v320, 2147483648
    %v336 = vor.u32 1.1754944e-38, %v335
    %v337 = vsel %vm334, %v336, %v332
    %v338 = vmul.f32 %v316, %v337
    %v339 = vrcp.pop %v323
    %v340 = vmul.f32 %v323, %v339
    %v341 = vsub.f32 1.0, %v340
    %v342 = vmul.f32 %v339, %v341
    %v343 = vadd.f32 %v339, %v342
    %vm344 = vweird.f32 %v323
    %vm345 = vweird.f32 %v339
    %vm346 = vmor %vm344, %vm345
    %v347 = vsel %vm346, %v339, %v343
    %v348 = vand.u32 2147483647, %v323
    %vm349 = vcmp.eq.f32.partialorder %v348, 8.507059e+37
    %v350 = vand.u32 %v323, 2147483648
    %v351 = vor.u32 1.1754944e-38, %v350
    %v352 = vsel %vm349, %v351, %v347
    %v353 = vmul.f32 %v317, %v352
    %v354 = vperm.slane %v139, 2
    %356 = vrot.lane.b32.xlu0 %v354, 16
    %v357 = vpop.permute.xlu0 %356
    %v359 = vmul.f32 %v133, %v357
    %v360 = vmul.f32 %v136, %v357
    %363 = vrot.lane.b32.xlu0 %v359, 112
    %v364 = vpop.permute.xlu0 %363
    %365 = vrot.lane.b32.xlu0 %v360, 112
    %v366 = vpop.permute.xlu0 %365
    %v369 = vsel %vm143, %v364, 0.0
    %370 = vadd.xlane.f32.xlu0 %v369
    %v371 = vpop.xlane.xlu0 %370
    %v372 = vsel %vm143, %v366, 0.0
    %373 = vadd.xlane.f32.xlu0 %v372
    %v374 = vpop.xlane.xlu0 %373
    %v375 = vrot.slane %v138, 2
    %376 = vrot.lane.b32.xlu0 %v133, 112
    %v377 = vpop.permute.xlu0 %376
    %378 = vrot.lane.b32.xlu0 %v136, 112
    %v379 = vpop.permute.xlu0 %378
    %v380 = vsel %vm143, %v375, 0
    %v382 = vsel %vm143, %v377, 0
    %v384 = vsel %vm143, %v379, 0
    %386 = vmatpush.xpose.msra.mxu0 0.0
    %387 = vmatpush.xpose.msra.mxu0 0.0
    %388 = vmatpush.xpose.msra.mxu0 0.0
    %389 = vmatpush.xpose.msra.mxu0 0.0
    %390 = vmatpush.xpose.msra.mxu0 0.0
    %391 = vmatpush.xpose.msra.mxu0 0.0
    %392 = vmatpush.xpose.msra.mxu0 0.0
    %393 = vmatpush.xpose.msra.mxu0 0.0
    %394 = vmatpush.xpose.msra.mxu0 0.0
    %395 = vmatpush.xpose.msra.mxu0 0.0
    %396 = vmatpush.xpose.msra.mxu0 0.0
    %397 = vmatpush.xpose.msra.mxu0 0.0
    %398 = vmatpush.xpose.msra.mxu0 0.0
    %399 = vmatpush.xpose.msra.mxu0 0.0
    %400 = vmatpush.xpose.msra.mxu0 %v384
    %401 = vmatpush.xpose.msra.mxu0 %v382
    %402 = vmatmul.f32.gmra.mxu0 %v380
    %v403 = vpop.f32.mrf.mxu0
    %v404 = vadd.f32 0.0, %v403
    %405 = vdwg.mxu0
    %v406 = vperm.slane %v404, 0
    %v407 = vadd.f32 %v371, %v406
    %v408 = vadd.f32 %v374, %v406
    %vm409 = vcmp.gt.f32.partialorder %v407, 0.0
    %vm410 = vcmp.gt.f32.partialorder %v408, 0.0
    %v411 = vmul.f32 %v407, 0.2
    %v412 = vmul.f32 %v408, 0.2
    %v413 = vsel %vm409, %v407, %v411
    %v414 = vsel %vm410, %v408, %v412
    %v415 = vsel %vm94, %v413, -1e+30
    %v416 = vsel %vm95, %v414, -1e+30
    %v417 = vsel %vm190, %v415, -inf
    %418 = vmax.xlane.f32.xlu0 %v417
    %v419 = vpop.xlane.xlu0 %418
    %v420 = vsel %vm190, %v416, -inf
    %421 = vmax.xlane.f32.xlu0 %v420
    %v422 = vpop.xlane.xlu0 %421
    %v423 = vsub.f32 %v415, %v419
    %v424 = vsub.f32 %v416, %v422
    %v425 = vmul.f32 %v423, 1.442695
    %v426 = vpow.pop %v425
    %v427 = vmul.f32 %v424, 1.442695
    %v428 = vpow.pop %v427
    %v429 = vsel %vm94, %v426, 0.0
    %v430 = vsel %vm95, %v428, 0.0
    %v431 = vsel %vm190, %v429, 0.0
    %432 = vadd.xlane.f32.xlu0 %v431
    %v433 = vpop.xlane.xlu0 %432
    %v434 = vsel %vm190, %v430, 0.0
    %435 = vadd.xlane.f32.xlu0 %v434
    %v436 = vpop.xlane.xlu0 %435
    %v437 = vrcp.pop %v433
    %v438 = vmul.f32 %v433, %v437
    %v439 = vsub.f32 1.0, %v438
    %v440 = vmul.f32 %v437, %v439
    %v441 = vadd.f32 %v437, %v440
    %vm442 = vweird.f32 %v433
    %vm443 = vweird.f32 %v437
    %vm444 = vmor %vm442, %vm443
    %v445 = vsel %vm444, %v437, %v441
    %v446 = vand.u32 2147483647, %v433
    %vm447 = vcmp.eq.f32.partialorder %v446, 8.507059e+37
    %v448 = vand.u32 %v433, 2147483648
    %v449 = vor.u32 1.1754944e-38, %v448
    %v450 = vsel %vm447, %v449, %v445
    %v451 = vmul.f32 %v429, %v450
    %v452 = vrcp.pop %v436
    %v453 = vmul.f32 %v436, %v452
    %v454 = vsub.f32 1.0, %v453
    %v455 = vmul.f32 %v452, %v454
    %v456 = vadd.f32 %v452, %v455
    %vm457 = vweird.f32 %v436
    %vm458 = vweird.f32 %v452
    %vm459 = vmor %vm457, %vm458
    %v460 = vsel %vm459, %v452, %v456
    %v461 = vand.u32 2147483647, %v436
    %vm462 = vcmp.eq.f32.partialorder %v461, 8.507059e+37
    %v463 = vand.u32 %v436, 2147483648
    %v464 = vor.u32 1.1754944e-38, %v463
    %v465 = vsel %vm462, %v464, %v460
    %v466 = vmul.f32 %v430, %v465
    %v467 = vperm.slane %v139, 3
    %469 = vrot.lane.b32.xlu0 %v467, 24
    %v470 = vpop.permute.xlu0 %469
    %v472 = vmul.f32 %v133, %v470
    %v473 = vmul.f32 %v136, %v470
    %476 = vrot.lane.b32.xlu0 %v472, 104
    %v477 = vpop.permute.xlu0 %476
    %478 = vrot.lane.b32.xlu0 %v473, 104
    %v479 = vpop.permute.xlu0 %478
    %v482 = vsel %vm143, %v477, 0.0
    %483 = vadd.xlane.f32.xlu0 %v482
    %v484 = vpop.xlane.xlu0 %483
    %v485 = vsel %vm143, %v479, 0.0
    %486 = vadd.xlane.f32.xlu0 %v485
    %v487 = vpop.xlane.xlu0 %486
    %v488 = vrot.slane %v138, 3
    %489 = vrot.lane.b32.xlu0 %v133, 104
    %v490 = vpop.permute.xlu0 %489
    %491 = vrot.lane.b32.xlu0 %v136, 104
    %v492 = vpop.permute.xlu0 %491
    %v493 = vsel %vm143, %v488, 0
    %v495 = vsel %vm143, %v490, 0
    %v497 = vsel %vm143, %v492, 0
    %499 = vmatpush.xpose.msra.mxu0 0.0
    %500 = vmatpush.xpose.msra.mxu0 0.0
    %501 = vmatpush.xpose.msra.mxu0 0.0
    %502 = vmatpush.xpose.msra.mxu0 0.0
    %503 = vmatpush.xpose.msra.mxu0 0.0
    %504 = vmatpush.xpose.msra.mxu0 0.0
    %505 = vmatpush.xpose.msra.mxu0 0.0
    %506 = vmatpush.xpose.msra.mxu0 0.0
    %507 = vmatpush.xpose.msra.mxu0 0.0
    %508 = vmatpush.xpose.msra.mxu0 0.0
    %509 = vmatpush.xpose.msra.mxu0 0.0
    %510 = vmatpush.xpose.msra.mxu0 0.0
    %511 = vmatpush.xpose.msra.mxu0 0.0
    %512 = vmatpush.xpose.msra.mxu0 0.0
    %513 = vmatpush.xpose.msra.mxu0 %v497
    %514 = vmatpush.xpose.msra.mxu0 %v495
    %515 = vmatmul.f32.gmra.mxu0 %v493
    %v516 = vpop.f32.mrf.mxu0
    %v517 = vadd.f32 0.0, %v516
    %518 = vdwg.mxu0
    %v519 = vperm.slane %v517, 0
    %v520 = vadd.f32 %v484, %v519
    %v521 = vadd.f32 %v487, %v519
    %vm522 = vcmp.gt.f32.partialorder %v520, 0.0
    %vm523 = vcmp.gt.f32.partialorder %v521, 0.0
    %v524 = vmul.f32 %v520, 0.2
    %v525 = vmul.f32 %v521, 0.2
    %v526 = vsel %vm522, %v520, %v524
    %v527 = vsel %vm523, %v521, %v525
    %v528 = vsel %vm94, %v526, -1e+30
    %v529 = vsel %vm95, %v527, -1e+30
    %v530 = vsel %vm190, %v528, -inf
    %531 = vmax.xlane.f32.xlu0 %v530
    %v532 = vpop.xlane.xlu0 %531
    %v533 = vsel %vm190, %v529, -inf
    %534 = vmax.xlane.f32.xlu0 %v533
    %v535 = vpop.xlane.xlu0 %534
    %v536 = vsub.f32 %v528, %v532
    %v537 = vsub.f32 %v529, %v535
    %v538 = vmul.f32 %v536, 1.442695
    %v539 = vpow.pop %v538
    %v540 = vmul.f32 %v537, 1.442695
    %v541 = vpow.pop %v540
    %v542 = vsel %vm94, %v539, 0.0
    %v543 = vsel %vm95, %v541, 0.0
    %v544 = vsel %vm190, %v542, 0.0
    %545 = vadd.xlane.f32.xlu0 %v544
    %v546 = vpop.xlane.xlu0 %545
    %v547 = vsel %vm190, %v543, 0.0
    %548 = vadd.xlane.f32.xlu0 %v547
    %v549 = vpop.xlane.xlu0 %548
    %v550 = vrcp.pop %v546
    %v551 = vmul.f32 %v546, %v550
    %v552 = vsub.f32 1.0, %v551
    %v553 = vmul.f32 %v550, %v552
    %v554 = vadd.f32 %v550, %v553
    %vm555 = vweird.f32 %v546
    %vm556 = vweird.f32 %v550
    %vm557 = vmor %vm555, %vm556
    %v558 = vsel %vm557, %v550, %v554
    %v559 = vand.u32 2147483647, %v546
    %vm560 = vcmp.eq.f32.partialorder %v559, 8.507059e+37
    %v561 = vand.u32 %v546, 2147483648
    %v562 = vor.u32 1.1754944e-38, %v561
    %v563 = vsel %vm560, %v562, %v558
    %v564 = vmul.f32 %v542, %v563
    %v565 = vrcp.pop %v549
    %v566 = vmul.f32 %v549, %v565
    %v567 = vsub.f32 1.0, %v566
    %v568 = vmul.f32 %v565, %v567
    %v569 = vadd.f32 %v565, %v568
    %vm570 = vweird.f32 %v549
    %vm571 = vweird.f32 %v565
    %vm572 = vmor %vm570, %vm571
    %v573 = vsel %vm572, %v565, %v569
    %v574 = vand.u32 2147483647, %v549
    %vm575 = vcmp.eq.f32.partialorder %v574, 8.507059e+37
    %v576 = vand.u32 %v549, 2147483648
    %v577 = vor.u32 1.1754944e-38, %v576
    %v578 = vsel %vm575, %v577, %v573
    %v579 = vmul.f32 %v543, %v578
    %v581 = vperm.slane %v98, 0
    %v584 = vsel %vm190, %v225, 0
    %v587 = vsel %vm190, %v240, 0
    %589 = vmatpush.msra.mxu0 0.0
    %590 = vmatpush.msra.mxu0 0.0
    %591 = vmatpush.msra.mxu0 0.0
    %592 = vmatpush.msra.mxu0 0.0
    %593 = vmatpush.msra.mxu0 0.0
    %594 = vmatpush.msra.mxu0 0.0
    %595 = vmatpush.msra.mxu0 0.0
    %596 = vmatpush.msra.mxu0 0.0
    %597 = vmatpush.msra.mxu0 0.0
    %598 = vmatpush.msra.mxu0 0.0
    %599 = vmatpush.msra.mxu0 0.0
    %600 = vmatpush.msra.mxu0 0.0
    %601 = vmatpush.msra.mxu0 0.0
    %602 = vmatpush.msra.mxu0 0.0
    %603 = vmatpush.msra.mxu0 %v136
    %604 = vmatpush.msra.mxu0 %v133
    %605 = vmatmul.f32.gmra.mxu0 %v584
    %v606 = vpop.f32.mrf.mxu0
    %v607 = vadd.f32 %v581, %v606
    %608 = vmatmul.f32.gmra.mxu0 %v587
    %v609 = vpop.f32.mrf.mxu0
    %v610 = vadd.f32 %v581, %v609
    %611 = vdwg.mxu0
    %vm612 = vcmp.gt.f32.partialorder %v607, 0.0
    %vm613 = vcmp.gt.f32.partialorder %v610, 0.0
    %v614 = vmul.f32 %v607, 1.442695
    %v615 = vpow.pop %v614
    %v616 = vmul.f32 %v610, 1.442695
    %v617 = vpow.pop %v616
    %v618 = vsub.f32 %v615, 1.0
    %v619 = vsub.f32 %v617, 1.0
    %v620 = vsel %vm612, %v607, %v618
    %v621 = vsel %vm613, %v610, %v619
    %624 = vrot.lane.b32.xlu0 %v581, 120
    %v625 = vpop.permute.xlu0 %624
    %v628 = vsel %vm190, %v338, 0
    %v631 = vsel %vm190, %v353, 0
    %633 = vmatpush.msra.mxu0 0.0
    %634 = vmatpush.msra.mxu0 0.0
    %635 = vmatpush.msra.mxu0 0.0
    %636 = vmatpush.msra.mxu0 0.0
    %637 = vmatpush.msra.mxu0 0.0
    %638 = vmatpush.msra.mxu0 0.0
    %639 = vmatpush.msra.mxu0 0.0
    %640 = vmatpush.msra.mxu0 0.0
    %641 = vmatpush.msra.mxu0 0.0
    %642 = vmatpush.msra.mxu0 0.0
    %643 = vmatpush.msra.mxu0 0.0
    %644 = vmatpush.msra.mxu0 0.0
    %645 = vmatpush.msra.mxu0 0.0
    %646 = vmatpush.msra.mxu0 0.0
    %647 = vmatpush.msra.mxu0 %v266
    %648 = vmatpush.msra.mxu0 %v264
    %649 = vmatmul.f32.gmra.mxu0 %v628
    %v650 = vpop.f32.mrf.mxu0
    %v651 = vadd.f32 %v625, %v650
    %652 = vmatmul.f32.gmra.mxu0 %v631
    %v653 = vpop.f32.mrf.mxu0
    %v654 = vadd.f32 %v625, %v653
    %655 = vdwg.mxu0
    %vm656 = vcmp.gt.f32.partialorder %v651, 0.0
    %vm657 = vcmp.gt.f32.partialorder %v654, 0.0
    %v658 = vmul.f32 %v651, 1.442695
    %v659 = vpow.pop %v658
    %v660 = vmul.f32 %v654, 1.442695
    %v661 = vpow.pop %v660
    %v662 = vsub.f32 %v659, 1.0
    %v663 = vsub.f32 %v661, 1.0
    %v664 = vsel %vm656, %v651, %v662
    %v665 = vsel %vm657, %v654, %v663
    %v667 = vsel %vm143, %v664, 0
    %v670 = vsel %vm143, %v665, 0
    %672 = vmatpush.msra.mxu0 0.0
    %673 = vmatpush.msra.mxu0 0.0
    %674 = vmatpush.msra.mxu0 0.0
    %675 = vmatpush.msra.mxu0 0.0
    %676 = vmatpush.msra.mxu0 0.0
    %677 = vmatpush.msra.mxu0 0.0
    %678 = vmatpush.msra.mxu0 0.0
    %679 = vmatpush.msra.mxu0 0.0
    %680 = vmatpush.msra.mxu0 0.0
    %681 = vmatpush.msra.mxu0 0.0
    %682 = vmatpush.msra.mxu0 0.0
    %683 = vmatpush.msra.mxu0 0.0
    %684 = vmatpush.msra.mxu0 0.0
    %685 = vmatpush.msra.mxu0 0.0
    %686 = vmatpush.msra.mxu0 0.0
    %687 = vmatpush.msra.mxu0 %v101
    %688 = vmatmul.f32.gmra.mxu0 %v667
    %v689 = vpop.f32.mrf.mxu0
    %v690 = vadd.f32 0.0, %v689
    %691 = vmatmul.f32.gmra.mxu0 %v670
    %v692 = vpop.f32.mrf.mxu0
    %v693 = vadd.f32 0.0, %v692
    %694 = vdwg.mxu0
    %v696 = vsel %vm143, %v620, 0
    %v699 = vsel %vm143, %v621, 0
    %701 = vmatpush.msra.mxu0 0.0
    %702 = vmatpush.msra.mxu0 0.0
    %703 = vmatpush.msra.mxu0 0.0
    %704 = vmatpush.msra.mxu0 0.0
    %705 = vmatpush.msra.mxu0 0.0
    %706 = vmatpush.msra.mxu0 0.0
    %707 = vmatpush.msra.mxu0 0.0
    %708 = vmatpush.msra.mxu0 0.0
    %709 = vmatpush.msra.mxu0 0.0
    %710 = vmatpush.msra.mxu0 0.0
    %711 = vmatpush.msra.mxu0 0.0
    %712 = vmatpush.msra.mxu0 0.0
    %713 = vmatpush.msra.mxu0 0.0
    %714 = vmatpush.msra.mxu0 0.0
    %715 = vmatpush.msra.mxu0 0.0
    %716 = vmatpush.msra.mxu0 %v100
    %717 = vmatmul.f32.gmra.mxu0 %v696
    %v718 = vpop.f32.mrf.mxu0
    %v719 = vadd.f32 %v690, %v718
    %720 = vmatmul.f32.gmra.mxu0 %v699
    %v721 = vpop.f32.mrf.mxu0
    %v722 = vadd.f32 %v693, %v721
    %723 = vdwg.mxu0
    %726 = vrot.lane.b32.xlu0 %v581, 112
    %v727 = vpop.permute.xlu0 %726
    %v730 = vsel %vm190, %v451, 0
    %v733 = vsel %vm190, %v466, 0
    %735 = vmatpush.msra.mxu0 0.0
    %736 = vmatpush.msra.mxu0 0.0
    %737 = vmatpush.msra.mxu0 0.0
    %738 = vmatpush.msra.mxu0 0.0
    %739 = vmatpush.msra.mxu0 0.0
    %740 = vmatpush.msra.mxu0 0.0
    %741 = vmatpush.msra.mxu0 0.0
    %742 = vmatpush.msra.mxu0 0.0
    %743 = vmatpush.msra.mxu0 0.0
    %744 = vmatpush.msra.mxu0 0.0
    %745 = vmatpush.msra.mxu0 0.0
    %746 = vmatpush.msra.mxu0 0.0
    %747 = vmatpush.msra.mxu0 0.0
    %748 = vmatpush.msra.mxu0 0.0
    %749 = vmatpush.msra.mxu0 %v379
    %750 = vmatpush.msra.mxu0 %v377
    %751 = vmatmul.f32.gmra.mxu0 %v730
    %v752 = vpop.f32.mrf.mxu0
    %v753 = vadd.f32 %v727, %v752
    %754 = vmatmul.f32.gmra.mxu0 %v733
    %v755 = vpop.f32.mrf.mxu0
    %v756 = vadd.f32 %v727, %v755
    %757 = vdwg.mxu0
    %vm758 = vcmp.gt.f32.partialorder %v753, 0.0
    %vm759 = vcmp.gt.f32.partialorder %v756, 0.0
    %v760 = vmul.f32 %v753, 1.442695
    %v761 = vpow.pop %v760
    %v762 = vmul.f32 %v756, 1.442695
    %v763 = vpow.pop %v762
    %v764 = vsub.f32 %v761, 1.0
    %v765 = vsub.f32 %v763, 1.0
    %v766 = vsel %vm758, %v753, %v764
    %v767 = vsel %vm759, %v756, %v765
    %v769 = vsel %vm143, %v766, 0
    %v772 = vsel %vm143, %v767, 0
    %774 = vmatpush.msra.mxu0 0.0
    %775 = vmatpush.msra.mxu0 0.0
    %776 = vmatpush.msra.mxu0 0.0
    %777 = vmatpush.msra.mxu0 0.0
    %778 = vmatpush.msra.mxu0 0.0
    %779 = vmatpush.msra.mxu0 0.0
    %780 = vmatpush.msra.mxu0 0.0
    %781 = vmatpush.msra.mxu0 0.0
    %782 = vmatpush.msra.mxu0 0.0
    %783 = vmatpush.msra.mxu0 0.0
    %784 = vmatpush.msra.mxu0 0.0
    %785 = vmatpush.msra.mxu0 0.0
    %786 = vmatpush.msra.mxu0 0.0
    %787 = vmatpush.msra.mxu0 0.0
    %788 = vmatpush.msra.mxu0 0.0
    %789 = vmatpush.msra.mxu0 %v102
    %790 = vmatmul.f32.gmra.mxu0 %v769
    %v791 = vpop.f32.mrf.mxu0
    %v792 = vadd.f32 0.0, %v791
    %793 = vmatmul.f32.gmra.mxu0 %v772
    %v794 = vpop.f32.mrf.mxu0
    %v795 = vadd.f32 0.0, %v794
    %796 = vdwg.mxu0
    %v797 = vadd.f32 %v719, %v792
    %v798 = vadd.f32 %v722, %v795
    %801 = vrot.lane.b32.xlu0 %v581, 104
    %v802 = vpop.permute.xlu0 %801
    %v805 = vsel %vm190, %v564, 0
    %v808 = vsel %vm190, %v579, 0
    %810 = vmatpush.msra.mxu0 0.0
    %811 = vmatpush.msra.mxu0 0.0
    %812 = vmatpush.msra.mxu0 0.0
    %813 = vmatpush.msra.mxu0 0.0
    %814 = vmatpush.msra.mxu0 0.0
    %815 = vmatpush.msra.mxu0 0.0
    %816 = vmatpush.msra.mxu0 0.0
    %817 = vmatpush.msra.mxu0 0.0
    %818 = vmatpush.msra.mxu0 0.0
    %819 = vmatpush.msra.mxu0 0.0
    %820 = vmatpush.msra.mxu0 0.0
    %821 = vmatpush.msra.mxu0 0.0
    %822 = vmatpush.msra.mxu0 0.0
    %823 = vmatpush.msra.mxu0 0.0
    %824 = vmatpush.msra.mxu0 %v492
    %825 = vmatpush.msra.mxu0 %v490
    %826 = vmatmul.f32.gmra.mxu0 %v805
    %v827 = vpop.f32.mrf.mxu0
    %v828 = vadd.f32 %v802, %v827
    %829 = vmatmul.f32.gmra.mxu0 %v808
    %v830 = vpop.f32.mrf.mxu0
    %v831 = vadd.f32 %v802, %v830
    %832 = vdwg.mxu0
    %vm833 = vcmp.gt.f32.partialorder %v828, 0.0
    %vm834 = vcmp.gt.f32.partialorder %v831, 0.0
    %v835 = vmul.f32 %v828, 1.442695
    %v836 = vpow.pop %v835
    %v837 = vmul.f32 %v831, 1.442695
    %v838 = vpow.pop %v837
    %v839 = vsub.f32 %v836, 1.0
    %v840 = vsub.f32 %v838, 1.0
    %v841 = vsel %vm833, %v828, %v839
    %v842 = vsel %vm834, %v831, %v840
    %v844 = vsel %vm143, %v841, 0
    %v847 = vsel %vm143, %v842, 0
    %849 = vmatpush.msra.mxu0 0.0
    %850 = vmatpush.msra.mxu0 0.0
    %851 = vmatpush.msra.mxu0 0.0
    %852 = vmatpush.msra.mxu0 0.0
    %853 = vmatpush.msra.mxu0 0.0
    %854 = vmatpush.msra.mxu0 0.0
    %855 = vmatpush.msra.mxu0 0.0
    %856 = vmatpush.msra.mxu0 0.0
    %857 = vmatpush.msra.mxu0 0.0
    %858 = vmatpush.msra.mxu0 0.0
    %859 = vmatpush.msra.mxu0 0.0
    %860 = vmatpush.msra.mxu0 0.0
    %861 = vmatpush.msra.mxu0 0.0
    %862 = vmatpush.msra.mxu0 0.0
    %863 = vmatpush.msra.mxu0 0.0
    %864 = vmatpush.msra.mxu0 %v103
    %865 = vmatmul.f32.gmra.mxu0 %v844
    %v866 = vpop.f32.mrf.mxu0
    %v867 = vadd.f32 0.0, %v866
    %868 = vmatmul.f32.gmra.mxu0 %v847
    %v869 = vpop.f32.mrf.mxu0
    %v870 = vadd.f32 0.0, %v869
    %871 = vdwg.mxu0
    %v872 = vadd.f32 %v797, %v867
    %v873 = vadd.f32 %v798, %v870
    %v874 = vld [vmem:[%s7] sm:$0x3]
    %v875 = vld [vmem:[%s8] sm:$0x3]
    %v876 = vperm.slane %v875, 0
    %v877 = vmul.f32 %v872, %v876
    %v878 = vmul.f32 %v873, %v876
    %v879 = vsel %vm143, %v877, 0.0
    %880 = vadd.xlane.f32.xlu0 %v879
    %v881 = vpop.xlane.xlu0 %880
    %v882 = vsel %vm143, %v878, 0.0
    %883 = vadd.xlane.f32.xlu0 %v882
    %v884 = vpop.xlane.xlu0 %883
    %v886 = vsel %vm143, %v874, 0
    %v889 = vsel %vm143, %v872, 0
    %v892 = vsel %vm143, %v873, 0
    %894 = vmatpush.xpose.msra.mxu0 0.0
    %895 = vmatpush.xpose.msra.mxu0 0.0
    %896 = vmatpush.xpose.msra.mxu0 0.0
    %897 = vmatpush.xpose.msra.mxu0 0.0
    %898 = vmatpush.xpose.msra.mxu0 0.0
    %899 = vmatpush.xpose.msra.mxu0 0.0
    %900 = vmatpush.xpose.msra.mxu0 0.0
    %901 = vmatpush.xpose.msra.mxu0 0.0
    %902 = vmatpush.xpose.msra.mxu0 0.0
    %903 = vmatpush.xpose.msra.mxu0 0.0
    %904 = vmatpush.xpose.msra.mxu0 0.0
    %905 = vmatpush.xpose.msra.mxu0 0.0
    %906 = vmatpush.xpose.msra.mxu0 0.0
    %907 = vmatpush.xpose.msra.mxu0 0.0
    %908 = vmatpush.xpose.msra.mxu0 %v892
    %909 = vmatpush.xpose.msra.mxu0 %v889
    %910 = vmatmul.f32.gmra.mxu0 %v886
    %v911 = vpop.f32.mrf.mxu0
    %v912 = vadd.f32 0.0, %v911
    %913 = vdwg.mxu0
    %v914 = vperm.slane %v912, 0
    %v915 = vadd.f32 %v881, %v914
    %v916 = vadd.f32 %v884, %v914
    %vm917 = vcmp.gt.f32.partialorder %v915, 0.0
    %vm918 = vcmp.gt.f32.partialorder %v916, 0.0
    %v919 = vmul.f32 %v915, 0.2
    %v920 = vmul.f32 %v916, 0.2
    %v921 = vsel %vm917, %v915, %v919
    %v922 = vsel %vm918, %v916, %v920
    %v923 = vsel %vm94, %v921, -1e+30
    %v924 = vsel %vm95, %v922, -1e+30
    %v925 = vsel %vm190, %v923, -inf
    %926 = vmax.xlane.f32.xlu0 %v925
    %v927 = vpop.xlane.xlu0 %926
    %v928 = vsel %vm190, %v924, -inf
    %929 = vmax.xlane.f32.xlu0 %v928
    %v930 = vpop.xlane.xlu0 %929
    %v931 = vsub.f32 %v923, %v927
    %v932 = vsub.f32 %v924, %v930
    %v933 = vmul.f32 %v931, 1.442695
    %v934 = vpow.pop %v933
    %v935 = vmul.f32 %v932, 1.442695
    %v936 = vpow.pop %v935
    %v937 = vsel %vm94, %v934, 0.0
    %v938 = vsel %vm95, %v936, 0.0
    %v939 = vsel %vm190, %v937, 0.0
    %940 = vadd.xlane.f32.xlu0 %v939
    %v941 = vpop.xlane.xlu0 %940
    %v942 = vsel %vm190, %v938, 0.0
    %943 = vadd.xlane.f32.xlu0 %v942
    %v944 = vpop.xlane.xlu0 %943
    %v945 = vrcp.pop %v941
    %v946 = vmul.f32 %v941, %v945
    %v947 = vsub.f32 1.0, %v946
    %v948 = vmul.f32 %v945, %v947
    %v949 = vadd.f32 %v945, %v948
    %vm950 = vweird.f32 %v941
    %vm951 = vweird.f32 %v945
    %vm952 = vmor %vm950, %vm951
    %v953 = vsel %vm952, %v945, %v949
    %v954 = vand.u32 2147483647, %v941
    %vm955 = vcmp.eq.f32.partialorder %v954, 8.507059e+37
    %v956 = vand.u32 %v941, 2147483648
    %v957 = vor.u32 1.1754944e-38, %v956
    %v958 = vsel %vm955, %v957, %v953
    %v959 = vmul.f32 %v937, %v958
    %v960 = vrcp.pop %v944
    %v961 = vmul.f32 %v944, %v960
    %v962 = vsub.f32 1.0, %v961
    %v963 = vmul.f32 %v960, %v962
    %v964 = vadd.f32 %v960, %v963
    %vm965 = vweird.f32 %v944
    %vm966 = vweird.f32 %v960
    %vm967 = vmor %vm965, %vm966
    %v968 = vsel %vm967, %v960, %v964
    %v969 = vand.u32 2147483647, %v944
    %vm970 = vcmp.eq.f32.partialorder %v969, 8.507059e+37
    %v971 = vand.u32 %v944, 2147483648
    %v972 = vor.u32 1.1754944e-38, %v971
    %v973 = vsel %vm970, %v972, %v968
    %v974 = vmul.f32 %v938, %v973
    %v975 = vperm.slane %v875, 1
    %977 = vrot.lane.b32.xlu0 %v975, 8
    %v978 = vpop.permute.xlu0 %977
    %v980 = vmul.f32 %v872, %v978
    %v981 = vmul.f32 %v873, %v978
    %984 = vrot.lane.b32.xlu0 %v980, 120
    %v985 = vpop.permute.xlu0 %984
    %986 = vrot.lane.b32.xlu0 %v981, 120
    %v987 = vpop.permute.xlu0 %986
    %v990 = vsel %vm143, %v985, 0.0
    %991 = vadd.xlane.f32.xlu0 %v990
    %v992 = vpop.xlane.xlu0 %991
    %v993 = vsel %vm143, %v987, 0.0
    %994 = vadd.xlane.f32.xlu0 %v993
    %v995 = vpop.xlane.xlu0 %994
    %v996 = vrot.slane %v874, 1
    %997 = vrot.lane.b32.xlu0 %v872, 120
    %v998 = vpop.permute.xlu0 %997
    %999 = vrot.lane.b32.xlu0 %v873, 120
    %v1000 = vpop.permute.xlu0 %999
    %v1001 = vsel %vm143, %v996, 0
    %v1003 = vsel %vm143, %v998, 0
    %v1005 = vsel %vm143, %v1000, 0
    %1007 = vmatpush.xpose.msra.mxu0 0.0
    %1008 = vmatpush.xpose.msra.mxu0 0.0
    %1009 = vmatpush.xpose.msra.mxu0 0.0
    %1010 = vmatpush.xpose.msra.mxu0 0.0
    %1011 = vmatpush.xpose.msra.mxu0 0.0
    %1012 = vmatpush.xpose.msra.mxu0 0.0
    %1013 = vmatpush.xpose.msra.mxu0 0.0
    %1014 = vmatpush.xpose.msra.mxu0 0.0
    %1015 = vmatpush.xpose.msra.mxu0 0.0
    %1016 = vmatpush.xpose.msra.mxu0 0.0
    %1017 = vmatpush.xpose.msra.mxu0 0.0
    %1018 = vmatpush.xpose.msra.mxu0 0.0
    %1019 = vmatpush.xpose.msra.mxu0 0.0
    %1020 = vmatpush.xpose.msra.mxu0 0.0
    %1021 = vmatpush.xpose.msra.mxu0 %v1005
    %1022 = vmatpush.xpose.msra.mxu0 %v1003
    %1023 = vmatmul.f32.gmra.mxu0 %v1001
    %v1024 = vpop.f32.mrf.mxu0
    %v1025 = vadd.f32 0.0, %v1024
    %1026 = vdwg.mxu0
    %v1027 = vperm.slane %v1025, 0
    %v1028 = vadd.f32 %v992, %v1027
    %v1029 = vadd.f32 %v995, %v1027
    %vm1030 = vcmp.gt.f32.partialorder %v1028, 0.0
    %vm1031 = vcmp.gt.f32.partialorder %v1029, 0.0
    %v1032 = vmul.f32 %v1028, 0.2
    %v1033 = vmul.f32 %v1029, 0.2
    %v1034 = vsel %vm1030, %v1028, %v1032
    %v1035 = vsel %vm1031, %v1029, %v1033
    %v1036 = vsel %vm94, %v1034, -1e+30
    %v1037 = vsel %vm95, %v1035, -1e+30
    %v1038 = vsel %vm190, %v1036, -inf
    %1039 = vmax.xlane.f32.xlu0 %v1038
    %v1040 = vpop.xlane.xlu0 %1039
    %v1041 = vsel %vm190, %v1037, -inf
    %1042 = vmax.xlane.f32.xlu0 %v1041
    %v1043 = vpop.xlane.xlu0 %1042
    %v1044 = vsub.f32 %v1036, %v1040
    %v1045 = vsub.f32 %v1037, %v1043
    %v1046 = vmul.f32 %v1044, 1.442695
    %v1047 = vpow.pop %v1046
    %v1048 = vmul.f32 %v1045, 1.442695
    %v1049 = vpow.pop %v1048
    %v1050 = vsel %vm94, %v1047, 0.0
    %v1051 = vsel %vm95, %v1049, 0.0
    %v1052 = vsel %vm190, %v1050, 0.0
    %1053 = vadd.xlane.f32.xlu0 %v1052
    %v1054 = vpop.xlane.xlu0 %1053
    %v1055 = vsel %vm190, %v1051, 0.0
    %1056 = vadd.xlane.f32.xlu0 %v1055
    %v1057 = vpop.xlane.xlu0 %1056
    %v1058 = vrcp.pop %v1054
    %v1059 = vmul.f32 %v1054, %v1058
    %v1060 = vsub.f32 1.0, %v1059
    %v1061 = vmul.f32 %v1058, %v1060
    %v1062 = vadd.f32 %v1058, %v1061
    %vm1063 = vweird.f32 %v1054
    %vm1064 = vweird.f32 %v1058
    %vm1065 = vmor %vm1063, %vm1064
    %v1066 = vsel %vm1065, %v1058, %v1062
    %v1067 = vand.u32 2147483647, %v1054
    %vm1068 = vcmp.eq.f32.partialorder %v1067, 8.507059e+37
    %v1069 = vand.u32 %v1054, 2147483648
    %v1070 = vor.u32 1.1754944e-38, %v1069
    %v1071 = vsel %vm1068, %v1070, %v1066
    %v1072 = vmul.f32 %v1050, %v1071
    %v1073 = vrcp.pop %v1057
    %v1074 = vmul.f32 %v1057, %v1073
    %v1075 = vsub.f32 1.0, %v1074
    %v1076 = vmul.f32 %v1073, %v1075
    %v1077 = vadd.f32 %v1073, %v1076
    %vm1078 = vweird.f32 %v1057
    %vm1079 = vweird.f32 %v1073
    %vm1080 = vmor %vm1078, %vm1079
    %v1081 = vsel %vm1080, %v1073, %v1077
    %v1082 = vand.u32 2147483647, %v1057
    %vm1083 = vcmp.eq.f32.partialorder %v1082, 8.507059e+37
    %v1084 = vand.u32 %v1057, 2147483648
    %v1085 = vor.u32 1.1754944e-38, %v1084
    %v1086 = vsel %vm1083, %v1085, %v1081
    %v1087 = vmul.f32 %v1051, %v1086
    %v1091 = vsel %vm190, %v1072, 0
    %v1094 = vsel %vm190, %v1087, 0
    %1096 = vmatpush.msra.mxu0 0.0
    %1097 = vmatpush.msra.mxu0 0.0
    %1098 = vmatpush.msra.mxu0 0.0
    %1099 = vmatpush.msra.mxu0 0.0
    %1100 = vmatpush.msra.mxu0 0.0
    %1101 = vmatpush.msra.mxu0 0.0
    %1102 = vmatpush.msra.mxu0 0.0
    %1103 = vmatpush.msra.mxu0 0.0
    %1104 = vmatpush.msra.mxu0 0.0
    %1105 = vmatpush.msra.mxu0 0.0
    %1106 = vmatpush.msra.mxu0 0.0
    %1107 = vmatpush.msra.mxu0 0.0
    %1108 = vmatpush.msra.mxu0 0.0
    %1109 = vmatpush.msra.mxu0 0.0
    %1110 = vmatpush.msra.mxu0 %v1000
    %1111 = vmatpush.msra.mxu0 %v998
    %1112 = vmatmul.f32.gmra.mxu0 %v1091
    %v1113 = vpop.f32.mrf.mxu0
    %v1114 = vadd.f32 0.0, %v1113
    %1115 = vmatmul.f32.gmra.mxu0 %v1094
    %v1116 = vpop.f32.mrf.mxu0
    %v1117 = vadd.f32 0.0, %v1116
    %1118 = vdwg.mxu0
    %v1120 = vperm.slane %v99, 0
    %v1123 = vsel %vm190, %v959, 0
    %v1126 = vsel %vm190, %v974, 0
    %1128 = vmatpush.msra.mxu0 0.0
    %1129 = vmatpush.msra.mxu0 0.0
    %1130 = vmatpush.msra.mxu0 0.0
    %1131 = vmatpush.msra.mxu0 0.0
    %1132 = vmatpush.msra.mxu0 0.0
    %1133 = vmatpush.msra.mxu0 0.0
    %1134 = vmatpush.msra.mxu0 0.0
    %1135 = vmatpush.msra.mxu0 0.0
    %1136 = vmatpush.msra.mxu0 0.0
    %1137 = vmatpush.msra.mxu0 0.0
    %1138 = vmatpush.msra.mxu0 0.0
    %1139 = vmatpush.msra.mxu0 0.0
    %1140 = vmatpush.msra.mxu0 0.0
    %1141 = vmatpush.msra.mxu0 0.0
    %1142 = vmatpush.msra.mxu0 %v873
    %1143 = vmatpush.msra.mxu0 %v872
    %1144 = vmatmul.f32.gmra.mxu0 %v1123
    %v1145 = vpop.f32.mrf.mxu0
    %v1146 = vadd.f32 %v1120, %v1145
    %1147 = vmatmul.f32.gmra.mxu0 %v1126
    %v1148 = vpop.f32.mrf.mxu0
    %v1149 = vadd.f32 %v1120, %v1148
    %1150 = vdwg.mxu0
    %v1151 = vadd.f32 %v1146, %v1114
    %v1152 = vadd.f32 %v1149, %v1117
    %1153 = vrot.lane.b32.xlu0 %v1120, 120
    %v1154 = vpop.permute.xlu0 %1153
    %v1156 = vadd.f32 %v1151, %v1154
    %v1157 = vadd.f32 %v1152, %v1154
    %v1158 = vmul.f32 %v1156, 0.5
    %v1159 = vmul.f32 %v1157, 0.5
    %1160 = vst.msk [vmem:[%s10] sm:$0xff] %vm143, %v1158
    %1161 = vst.msk [vmem:[%s10 + $0x8] sm:$0xff] %vm143, %v1159
    // Predicated region
    $region58: #{tpu_custom_call.1} parent=1 // pred_check
      _
    $region59: #{tpu_custom_call.1} parent=1 // pred_check_branch
      %1163 = sbr.rel (0) target = $region61
    $region60: #{tpu_custom_call.1} parent=1 // pred_region
      _
    $region61: #{tpu_custom_call.1} parent=1 // pred_fallthru
      _
    // Predicated region
    $region62: #{tpu_custom_call.1} parent=1 // pred_check
      _
    $region63: #{tpu_custom_call.1} parent=1 // pred_check_branch
      %1165 = sbr.rel (0) target = $region65
    $region64: #{tpu_custom_call.1} parent=1 // pred_region
      _
    $region65: #{tpu_custom_call.1} parent=1 // pred_fallthru
      _
    %1166 = vsyncpa [#allocation3], 1
    %1167 = vsyncpa [#allocation5], 1
    %1168 = vsyncpa [#allocation8], 1

</llo_original>
